<compile_context>
chip_gen: v5e
topology: v5e:2x2
jax: 0.10.0
libtpu: 0.0.40
codegen_flags: <defaults>
</compile_context>

<pallas_src>
import functools

import numpy as np
import jax
import jax.numpy as jnp
from jax.experimental import pallas as pl
from jax.experimental.pallas import tpu as pltpu

BN_EPS = 1e-5


def _round_up(x, m):
    return ((x + m - 1) // m) * m


def _upsample_conv(x2, aw, ah, masks, wfold, *, cin_p, hi, ho, wo):
    """Nearest upsample + 3x3 conv (pad 1) for one sample, transposed layout.

    x2    : (cin_p*hi, Wi)        pre-upsample input, channels-major on sublanes
    aw    : (Wi, Wo)              one-hot width nearest-upsample selection
    ah    : (Ho, Hi)              one-hot height nearest-upsample selection
    masks : (9, Ho*Wo)            border-validity masks for the 3x3 taps
    wfold : (cout_p, 9*cin_p)     folded conv weight
    returns (cout_p, Ho*Wo)       conv output, spatial lane-dense
    """
    n_sp = ho * wo
    # Width nearest-upsample: tiny (Wi, Wo) one-hot matmul.
    xw = jnp.dot(x2, aw, preferred_element_type=jnp.float32)          # (cin_p*hi, wo)
    xw3 = xw.reshape(cin_p, hi, wo)
    # Height nearest-upsample: batched (cin_p) matmul with a tiny (Ho, Hi) one-hot.
    ah_b = jnp.broadcast_to(ah[None, :, :], (cin_p, ho, hi))
    xup = jnp.einsum("coh,chw->cow", ah_b, xw3,
                     preferred_element_type=jnp.float32)               # (cin_p, ho, wo)
    xup = xup.reshape(cin_p, n_sp)                                     # lane-flat spatial

    # 3x3 taps = static lane shifts of the flat upsampled activation; wrapped / padded
    # positions are zeroed by the precomputed masks (exact zero-pad semantics).
    taps = []
    t = 0
    for dh in range(3):
        for dw in range(3):
            s = (dh - 1) * wo + (dw - 1)
            if s == 0:
                taps.append(xup)                                       # center tap
            else:
                # jnp.roll = static lane slices + concat (guaranteed semantics);
                # pltpu.roll (XLU rotate) is the cheaper swap-in for big tiles.
                taps.append(jnp.roll(xup, -s, axis=1) * masks[t:t + 1, :])
            t += 1
    cols = jnp.concatenate(taps, axis=0)                               # (9*cin_p, n_sp)

    # One K = 9*cin_p matmul; output channels on sublanes, spatial lane-dense.
    return jnp.dot(wfold, cols, preferred_element_type=jnp.float32)   # (cout_p, n_sp)


def stats_kernel(x_ref, aw_ref, ah_ref, mask_ref, w_ref, stat_ref,
                 *, cin_p, hi, ho, wo):
    # Pass 1: per-sample BN partial statistics only (no conv round-trip to HBM).
    conv = _upsample_conv(x_ref[0], aw_ref[...], ah_ref[...], mask_ref[...], w_ref[...],
                          cin_p=cin_p, hi=hi, ho=ho, wo=wo)            # (cout_p, n_sp)
    n_sp = ho * wo
    s1 = jnp.sum(conv, axis=1, keepdims=True)                          # (cout_p, 1)
    mu = s1 * (1.0 / n_sp)
    d = conv - mu
    m2 = jnp.sum(d * d, axis=1, keepdims=True)                         # centered SSQ
    stat_ref[0] = jnp.concatenate([s1, m2], axis=1)                    # (cout_p, 2)


def bn_relu_kernel(x_ref, aw_ref, ah_ref, mask_ref, w_ref, ss_ref, out_ref,
                   *, cin_p, hi, ho, wo, cout):
    # Pass 2: recompute the conv (cheap) and fuse BN scale/shift + ReLU; write NCHW
    # with a lane-dense (Ho*Wo) minor dim.
    conv = _upsample_conv(x_ref[0], aw_ref[...], ah_ref[...], mask_ref[...], w_ref[...],
                          cin_p=cin_p, hi=hi, ho=ho, wo=wo)            # (cout_p, n_sp)
    ss = ss_ref[...]                                                   # (cout_p, 2)
    y = jnp.maximum(conv * ss[:, 0:1] + ss[:, 1:2], 0.0)
    out_ref[0] = y[:cout, :]                                           # (cout, n_sp)


@functools.partial(jax.jit, static_argnames=("size_out",))
def up_conv_forward(x_nchw, weight_oihw, bias, gamma, beta, *, size_out):
    """Matches PyTorch up_conv.forward (training-mode BatchNorm). Returns NCHW."""
    del bias  # Per-channel constant; training-mode BN subtracts the batch mean, so the
              # conv bias cancels exactly -> skip the full-tensor add in the kernel.

    N, Cin, Hi, Wi = x_nchw.shape
    Ho, Wo = size_out
    Cout = weight_oihw.shape[0]
    Cin_p = _round_up(Cin, 8)          # sublane-aligned input channels
    Cout_p = _round_up(Cout, 8)        # sublane-aligned output channels (NOT 128 lanes)
    n_sp = Ho * Wo

    # ---- host-side constants (tiny, static shapes) ---------------------------------
    # Nearest-neighbour indices (PyTorch: src = floor(dst * in / out)).
    idx_h = (np.arange(Ho) * Hi) // Ho
    idx_w = (np.arange(Wo) * Wi) // Wo
    aw_np = np.zeros((Wi, Wo), np.float32)
    aw_np[idx_w, np.arange(Wo)] = 1.0
    ah_np = np.zeros((Ho, Hi), np.float32)
    ah_np[np.arange(Ho), idx_h] = 1.0

    # Border-validity masks for the nine 3x3 taps (zero-pad semantics of the conv).
    ho_g = np.arange(Ho)[:, None]
    wo_g = np.arange(Wo)[None, :]
    masks_np = np.zeros((9, n_sp), np.float32)
    t = 0
    for dh in range(3):
        for dw in range(3):
            valid = ((ho_g + dh - 1 >= 0) & (ho_g + dh - 1 < Ho) &
                     (wo_g + dw - 1 >= 0) & (wo_g + dw - 1 < Wo))
            masks_np[t] = valid.reshape(-1).astype(np.float32)
            t += 1

    aw = jnp.asarray(aw_np)
    ah = jnp.asarray(ah_np)
    masks = jnp.asarray(masks_np)

    # Folded conv weight: (Cout_p, 9*Cin_p), column index = (dh*3+dw)*Cin_p + ci.
    w_pad = jnp.pad(weight_oihw.astype(jnp.float32),
                    ((0, Cout_p - Cout), (0, Cin_p - Cin), (0, 0), (0, 0)))
    wfold = jnp.transpose(w_pad, (0, 2, 3, 1)).reshape(Cout_p, 9 * Cin_p)

    # Small pre-upsample input in channels-on-sublane layout: (N, Cin_p*Hi, Wi).
    x_r = jnp.pad(x_nchw.astype(jnp.float32),
                  ((0, 0), (0, Cin_p - Cin), (0, 0), (0, 0))).reshape(N, Cin_p * Hi, Wi)

    cparams = pltpu.CompilerParams(
        dimension_semantics=("parallel",),      # batch axis -> both TensorCores on v7x
        vmem_limit_bytes=32 * 1024 * 1024,      # within every generation's budget
    )

    const_specs = [
        pl.BlockSpec((Wi, Wo), lambda n: (0, 0)),
        pl.BlockSpec((Ho, Hi), lambda n: (0, 0)),
        pl.BlockSpec((9, n_sp), lambda n: (0, 0)),
        pl.BlockSpec((Cout_p, 9 * Cin_p), lambda n: (0, 0)),
    ]
    x_spec = pl.BlockSpec((1, Cin_p * Hi, Wi), lambda n: (n, 0, 0))

    # ---- pass 1: per-sample BN partial stats (sum + centered sum-of-squares) -------
    kernel1 = functools.partial(stats_kernel, cin_p=Cin_p, hi=Hi, ho=Ho, wo=Wo)
    stats = pl.pallas_call(
        kernel1,
        grid=(N,),
        in_specs=[x_spec] + const_specs,
        out_specs=pl.BlockSpec((1, Cout_p, 2), lambda n: (n, 0, 0)),
        out_shape=jax.ShapeDtypeStruct((N, Cout_p, 2), jnp.float32),
        compiler_params=cparams,
    )(x_r, aw, ah, masks, wfold)

    # ---- global BN statistics: pooled (Chan) combination across samples ------------
    cnt = float(n_sp)
    total = float(N) * cnt
    s1 = stats[:, :, 0]                                   # (N, Cout_p) per-sample sums
    m2 = stats[:, :, 1]                                   # per-sample centered SSQ
    mu_n = s1 / cnt
    mean = jnp.sum(s1, axis=0) / total                    # (Cout_p,)
    var = (jnp.sum(m2, axis=0)
           + cnt * jnp.sum((mu_n - mean[None, :]) ** 2, axis=0)) / total
    var = jnp.maximum(var, 0.0)
    inv = jax.lax.rsqrt(var + BN_EPS)
    gamma_p = jnp.pad(gamma.astype(jnp.float32), (0, Cout_p - Cout))
    beta_p = jnp.pad(beta.astype(jnp.float32), (0, Cout_p - Cout))
    scale = gamma_p * inv                                 # y = conv*scale + shift
    shift = beta_p - mean * scale
    ss = jnp.stack([scale, shift], axis=1)                # (Cout_p, 2)

    # ---- pass 2: recompute conv + fused scale/shift/ReLU, lane-dense NCHW output ---
    kernel2 = functools.partial(bn_relu_kernel, cin_p=Cin_p, hi=Hi, ho=Ho, wo=Wo,
                                cout=Cout)
    y = pl.pallas_call(
        kernel2,
        grid=(N,),
        in_specs=[x_spec] + const_specs + [pl.BlockSpec((Cout_p, 2), lambda n: (0, 0))],
        out_specs=pl.BlockSpec((1, Cout, n_sp), lambda n: (n, 0, 0)),
        out_shape=jax.ShapeDtypeStruct((N, Cout, n_sp), jnp.float32),
        compiler_params=cparams,
    )(x_r, aw, ah, masks, wfold, ss)

    return y.reshape(N, Cout, Ho, Wo)                     # pure metadata


def reference_forward(x_nchw, weight_oihw, bias, gamma, beta, size_out):
    """Pure-JAX reference mirroring the PyTorch module (with the conv bias)."""
    N, Cin, Hi, Wi = x_nchw.shape
    Ho, Wo = size_out
    idx_h = (jnp.arange(Ho) * Hi) // Ho
    idx_w = (jnp.arange(Wo) * Wi) // Wo
    x_up = x_nchw[:, :, idx_h, :][:, :, :, idx_w]
    x_nhwc = jnp.transpose(x_up, (0, 2, 3, 1))
    w_hwio = jnp.transpose(weight_oihw, (2, 3, 1, 0))
    y = jax.lax.conv_general_dilated(
        x_nhwc, w_hwio, window_strides=(1, 1), padding=((1, 1), (1, 1)),
        dimension_numbers=("NHWC", "HWIO", "NHWC"))
    y = y + bias.reshape(1, 1, 1, -1)
    mean = jnp.mean(y, axis=(0, 1, 2), keepdims=True)
    var = jnp.mean((y - mean) ** 2, axis=(0, 1, 2), keepdims=True)
    y = (y - mean) * jax.lax.rsqrt(var + BN_EPS)
    y = y * gamma.reshape(1, 1, 1, -1) + beta.reshape(1, 1, 1, -1)
    y = jnp.maximum(y, 0.0)
    return jnp.transpose(y, (0, 3, 1, 2))


if __name__ == "__main__":
    # up_conv(ch_in=4, ch_out=8, size_out=(16,16)) applied to a (2,4,8,8) input.
    ch_in, ch_out = 4, 8
    size_out = (16, 16)
    N, Hi, Wi = 2, 8, 8

    key = jax.random.PRNGKey(0)
    kx, kw, kb = jax.random.split(key, 3)

    x = jax.random.normal(kx, (N, ch_in, Hi, Wi), dtype=jnp.float32)

    fan_in = ch_in * 3 * 3
    bound = 1.0 / (fan_in ** 0.5)
    weight = jax.random.uniform(kw, (ch_out, ch_in, 3, 3),
                                minval=-bound, maxval=bound, dtype=jnp.float32)
    bias = jax.random.uniform(kb, (ch_out,), minval=-bound, maxval=bound,
                              dtype=jnp.float32)
    gamma = jnp.ones((ch_out,), dtype=jnp.float32)   # BatchNorm2d default weight
    beta = jnp.zeros((ch_out,), dtype=jnp.float32)   # BatchNorm2d default bias

    out = up_conv_forward(x, weight, bias, gamma, beta, size_out=size_out)
    out = jax.block_until_ready(out)

    ref = jax.block_until_ready(
        reference_forward(x, weight, bias, gamma, beta, size_out))

    assert out.shape == (N, ch_out, size_out[0], size_out[1]), out.shape
    assert jnp.allclose(out, ref, rtol=1e-3, atol=1e-3), \
        float(jnp.max(jnp.abs(out - ref)))

    print("KERNEL_OK")
</pallas_src>

<mosaic_0001>
module attributes {stable_mosaic.version = 11 : i64} {
  func.func @stats_kernel(%arg0: i32, %arg1: memref<1x64x8xf32, #tpu.memory_space<vmem>>, %arg2: memref<8x16xf32, #tpu.memory_space<vmem>>, %arg3: memref<16x8xf32, #tpu.memory_space<vmem>>, %arg4: memref<9x256xf32, #tpu.memory_space<vmem>>, %arg5: memref<8x72xf32, #tpu.memory_space<vmem>>, %arg6: memref<1x8x2xf32, #tpu.memory_space<vmem>>) attributes {dimension_semantics = [#tpu.dimension_semantics<parallel>], iteration_bounds = array<i64: 2>, scalar_prefetch = 0 : i64, scratch_operands = 0 : i64, tpu.core_type = #tpu.core_type<tc>, window_params = [{transform_indices = @transform_0, window_bounds = array<i64: 1, 64, 8>}, {pipeline_mode = #tpu.pipeline_mode<synchronous>, transform_indices = @transform_1, window_bounds = array<i64: 8, 16>}, {pipeline_mode = #tpu.pipeline_mode<synchronous>, transform_indices = @transform_2, window_bounds = array<i64: 16, 8>}, {pipeline_mode = #tpu.pipeline_mode<synchronous>, transform_indices = @transform_3, window_bounds = array<i64: 9, 256>}, {pipeline_mode = #tpu.pipeline_mode<synchronous>, transform_indices = @transform_4, window_bounds = array<i64: 8, 72>}, {transform_indices = @transform_5, window_bounds = array<i64: 1, 8, 2>}]} {
    %c0 = arith.constant 0 : index
    %c0_0 = arith.constant 0 : index
    %c0_1 = arith.constant 0 : index
    %0 = vector.load %arg1[%c0, %c0_0, %c0_1] : memref<1x64x8xf32, #tpu.memory_space<vmem>>, vector<1x64x8xf32>
    %1 = vector.shape_cast %0 : vector<1x64x8xf32> to vector<64x8xf32>
    %c0_2 = arith.constant 0 : index
    %c0_3 = arith.constant 0 : index
    %2 = vector.load %arg2[%c0_2, %c0_3] : memref<8x16xf32, #tpu.memory_space<vmem>>, vector<8x16xf32>
    %c0_4 = arith.constant 0 : index
    %c0_5 = arith.constant 0 : index
    %3 = vector.load %arg3[%c0_4, %c0_5] : memref<16x8xf32, #tpu.memory_space<vmem>>, vector<16x8xf32>
    %c0_6 = arith.constant 0 : index
    %c0_7 = arith.constant 0 : index
    %4 = vector.load %arg4[%c0_6, %c0_7] : memref<9x256xf32, #tpu.memory_space<vmem>>, vector<9x256xf32>
    %c0_8 = arith.constant 0 : index
    %c0_9 = arith.constant 0 : index
    %5 = vector.load %arg5[%c0_8, %c0_9] : memref<8x72xf32, #tpu.memory_space<vmem>>, vector<8x72xf32>
    %cst = arith.constant dense<0.000000e+00> : vector<64x16xf32>
    %6 = tpu.matmul %1, %2, %cst {dimension_numbers = #tpu.dot_dimension_numbers<[1], [0], [0], [1], [0, 0, 1, 1], [], []>} : vector<64x8xf32>, vector<8x16xf32>, vector<64x16xf32> -> vector<64x16xf32>
    %7 = vector.shape_cast %6 : vector<64x16xf32> to vector<8x8x16xf32>
    %8 = vector.shape_cast %3 : vector<16x8xf32> to vector<1x16x8xf32>
    %9 = vector.shape_cast %8 : vector<1x16x8xf32> to vector<1x16x8xf32>
    %10 = vector.broadcast %9 : vector<1x16x8xf32> to vector<8x16x8xf32>
    "tpu.trace_start"() <{level = 10 : i32, message = "coh,chw->cow"}> : () -> ()
    %cst_10 = arith.constant dense<0.000000e+00> : vector<8x16x16xf32>
    %11 = tpu.matmul %10, %7, %cst_10 {dimension_numbers = #tpu.dot_dimension_numbers<[2], [1], [1], [2], [0, 0, 0, 1, 1, 2], [0], [0]>} : vector<8x16x8xf32>, vector<8x8x16xf32>, vector<8x16x16xf32> -> vector<8x16x16xf32>
    "tpu.trace_stop"() : () -> ()
    %12 = vector.shape_cast %11 : vector<8x16x16xf32> to vector<8x256xf32>
    %13 = vector.extract_strided_slice %12 {offsets = [0, 239], sizes = [8, 17], strides = [1, 1]} : vector<8x256xf32> to vector<8x17xf32>
    %14 = vector.extract_strided_slice %12 {offsets = [0, 0], sizes = [8, 239], strides = [1, 1]} : vector<8x256xf32> to vector<8x239xf32>
    %15 = tpu.concatenate %13, %14 in 1 : vector<8x17xf32>, vector<8x239xf32> -> vector<8x256xf32>
    %16 = vector.extract_strided_slice %4 {offsets = [0, 0], sizes = [1, 256], strides = [1, 1]} : vector<9x256xf32> to vector<1x256xf32>
    %17 = vector.broadcast %16 : vector<1x256xf32> to vector<8x256xf32>
    %18 = arith.mulf %15, %17 : vector<8x256xf32>
    %19 = vector.extract_strided_slice %12 {offsets = [0, 240], sizes = [8, 16], strides = [1, 1]} : vector<8x256xf32> to vector<8x16xf32>
    %20 = vector.extract_strided_slice %12 {offsets = [0, 0], sizes = [8, 240], strides = [1, 1]} : vector<8x256xf32> to vector<8x240xf32>
    %21 = tpu.concatenate %19, %20 in 1 : vector<8x16xf32>, vector<8x240xf32> -> vector<8x256xf32>
    %22 = vector.extract_strided_slice %4 {offsets = [1, 0], sizes = [1, 256], strides = [1, 1]} : vector<9x256xf32> to vector<1x256xf32>
    %23 = vector.broadcast %22 : vector<1x256xf32> to vector<8x256xf32>
    %24 = arith.mulf %21, %23 : vector<8x256xf32>
    %25 = vector.extract_strided_slice %12 {offsets = [0, 241], sizes = [8, 15], strides = [1, 1]} : vector<8x256xf32> to vector<8x15xf32>
    %26 = vector.extract_strided_slice %12 {offsets = [0, 0], sizes = [8, 241], strides = [1, 1]} : vector<8x256xf32> to vector<8x241xf32>
    %27 = tpu.concatenate %25, %26 in 1 : vector<8x15xf32>, vector<8x241xf32> -> vector<8x256xf32>
    %28 = vector.extract_strided_slice %4 {offsets = [2, 0], sizes = [1, 256], strides = [1, 1]} : vector<9x256xf32> to vector<1x256xf32>
    %29 = vector.broadcast %28 : vector<1x256xf32> to vector<8x256xf32>
    %30 = arith.mulf %27, %29 : vector<8x256xf32>
    %31 = vector.extract_strided_slice %12 {offsets = [0, 255], sizes = [8, 1], strides = [1, 1]} : vector<8x256xf32> to vector<8x1xf32>
    %32 = vector.extract_strided_slice %12 {offsets = [0, 0], sizes = [8, 255], strides = [1, 1]} : vector<8x256xf32> to vector<8x255xf32>
    %33 = tpu.concatenate %31, %32 in 1 : vector<8x1xf32>, vector<8x255xf32> -> vector<8x256xf32>
    %34 = vector.extract_strided_slice %4 {offsets = [3, 0], sizes = [1, 256], strides = [1, 1]} : vector<9x256xf32> to vector<1x256xf32>
    %35 = vector.broadcast %34 : vector<1x256xf32> to vector<8x256xf32>
    %36 = arith.mulf %33, %35 : vector<8x256xf32>
    %37 = vector.extract_strided_slice %12 {offsets = [0, 1], sizes = [8, 255], strides = [1, 1]} : vector<8x256xf32> to vector<8x255xf32>
    %38 = vector.extract_strided_slice %12 {offsets = [0, 0], sizes = [8, 1], strides = [1, 1]} : vector<8x256xf32> to vector<8x1xf32>
    %39 = tpu.concatenate %37, %38 in 1 : vector<8x255xf32>, vector<8x1xf32> -> vector<8x256xf32>
    %40 = vector.extract_strided_slice %4 {offsets = [5, 0], sizes = [1, 256], strides = [1, 1]} : vector<9x256xf32> to vector<1x256xf32>
    %41 = vector.broadcast %40 : vector<1x256xf32> to vector<8x256xf32>
    %42 = arith.mulf %39, %41 : vector<8x256xf32>
    %43 = vector.extract_strided_slice %12 {offsets = [0, 15], sizes = [8, 241], strides = [1, 1]} : vector<8x256xf32> to vector<8x241xf32>
    %44 = vector.extract_strided_slice %12 {offsets = [0, 0], sizes = [8, 15], strides = [1, 1]} : vector<8x256xf32> to vector<8x15xf32>
    %45 = tpu.concatenate %43, %44 in 1 : vector<8x241xf32>, vector<8x15xf32> -> vector<8x256xf32>
    %46 = vector.extract_strided_slice %4 {offsets = [6, 0], sizes = [1, 256], strides = [1, 1]} : vector<9x256xf32> to vector<1x256xf32>
    %47 = vector.broadcast %46 : vector<1x256xf32> to vector<8x256xf32>
    %48 = arith.mulf %45, %47 : vector<8x256xf32>
    %49 = vector.extract_strided_slice %12 {offsets = [0, 16], sizes = [8, 240], strides = [1, 1]} : vector<8x256xf32> to vector<8x240xf32>
    %50 = vector.extract_strided_slice %12 {offsets = [0, 0], sizes = [8, 16], strides = [1, 1]} : vector<8x256xf32> to vector<8x16xf32>
    %51 = tpu.concatenate %49, %50 in 1 : vector<8x240xf32>, vector<8x16xf32> -> vector<8x256xf32>
    %52 = vector.extract_strided_slice %4 {offsets = [7, 0], sizes = [1, 256], strides = [1, 1]} : vector<9x256xf32> to vector<1x256xf32>
    %53 = vector.broadcast %52 : vector<1x256xf32> to vector<8x256xf32>
    %54 = arith.mulf %51, %53 : vector<8x256xf32>
    %55 = vector.extract_strided_slice %12 {offsets = [0, 17], sizes = [8, 239], strides = [1, 1]} : vector<8x256xf32> to vector<8x239xf32>
    %56 = vector.extract_strided_slice %12 {offsets = [0, 0], sizes = [8, 17], strides = [1, 1]} : vector<8x256xf32> to vector<8x17xf32>
    %57 = tpu.concatenate %55, %56 in 1 : vector<8x239xf32>, vector<8x17xf32> -> vector<8x256xf32>
    %58 = vector.extract_strided_slice %4 {offsets = [8, 0], sizes = [1, 256], strides = [1, 1]} : vector<9x256xf32> to vector<1x256xf32>
    %59 = vector.broadcast %58 : vector<1x256xf32> to vector<8x256xf32>
    %60 = arith.mulf %57, %59 : vector<8x256xf32>
    %61 = tpu.concatenate %18, %24, %30, %36, %12, %42, %48, %54, %60 in 0 : vector<8x256xf32>, vector<8x256xf32>, vector<8x256xf32>, vector<8x256xf32>, vector<8x256xf32>, vector<8x256xf32>, vector<8x256xf32>, vector<8x256xf32>, vector<8x256xf32> -> vector<72x256xf32>
    %cst_11 = arith.constant dense<0.000000e+00> : vector<8x256xf32>
    %62 = tpu.matmul %5, %61, %cst_11 {dimension_numbers = #tpu.dot_dimension_numbers<[1], [0], [0], [1], [0, 0, 1, 1], [], []>} : vector<8x72xf32>, vector<72x256xf32>, vector<8x256xf32> -> vector<8x256xf32>
    %cst_12 = arith.constant dense<0.000000e+00> : vector<8xf32>
    %63 = vector.multi_reduction <add>, %62, %cst_12 [1] : vector<8x256xf32> to vector<8xf32>
    %64 = vector.shape_cast %63 : vector<8xf32> to vector<8x1xf32>
    %cst_13 = arith.constant 3.906250e-03 : f32
    %65 = vector.broadcast %cst_13 : f32 to vector<8x1xf32>
    %66 = arith.mulf %64, %65 : vector<8x1xf32>
    %67 = vector.broadcast %66 : vector<8x1xf32> to vector<8x256xf32>
    %68 = arith.subf %62, %67 : vector<8x256xf32>
    %69 = arith.mulf %68, %68 : vector<8x256xf32>
    %cst_14 = arith.constant dense<0.000000e+00> : vector<8xf32>
    %70 = vector.multi_reduction <add>, %69, %cst_14 [1] : vector<8x256xf32> to vector<8xf32>
    %71 = vector.shape_cast %70 : vector<8xf32> to vector<8x1xf32>
    %72 = tpu.concatenate %64, %71 in 1 : vector<8x1xf32>, vector<8x1xf32> -> vector<8x2xf32>
    %c0_15 = arith.constant 0 : index
    %c0_16 = arith.constant 0 : index
    %c0_17 = arith.constant 0 : index
    %73 = vector.load %arg6[%c0_15, %c0_16, %c0_17] : memref<1x8x2xf32, #tpu.memory_space<vmem>>, vector<1x8x2xf32>
    %74 = vector.shape_cast %73 : vector<1x8x2xf32> to vector<8x2xf32>
    %75 = vector.shape_cast %72 : vector<8x2xf32> to vector<1x8x2xf32>
    tpu.vector_store %arg6[%c0_15, %c0_16, %c0_17], %75 {strides = array<i32>} : memref<1x8x2xf32, #tpu.memory_space<vmem>>, vector<1x8x2xf32>,
    return
  }
  func.func @transform_0(%arg0: i32) -> (i32, i32, i32) {
    %c0_i32 = arith.constant 0 : i32
    %c0_i32_0 = arith.constant 0 : i32
    %c0_i32_1 = arith.constant 0 : i32
    return %arg0, %c0_i32, %c0_i32_0 : i32, i32, i32
  }
  func.func @transform_1(%arg0: i32) -> (i32, i32) {
    %c0_i32 = arith.constant 0 : i32
    %c0_i32_0 = arith.constant 0 : i32
    %c0_i32_1 = arith.constant 0 : i32
    return %c0_i32, %c0_i32_0 : i32, i32
  }
  func.func @transform_2(%arg0: i32) -> (i32, i32) {
    %c0_i32 = arith.constant 0 : i32
    %c0_i32_0 = arith.constant 0 : i32
    %c0_i32_1 = arith.constant 0 : i32
    return %c0_i32, %c0_i32_0 : i32, i32
  }
  func.func @transform_3(%arg0: i32) -> (i32, i32) {
    %c0_i32 = arith.constant 0 : i32
    %c0_i32_0 = arith.constant 0 : i32
    %c0_i32_1 = arith.constant 0 : i32
    return %c0_i32, %c0_i32_0 : i32, i32
  }
  func.func @transform_4(%arg0: i32) -> (i32, i32) {
    %c0_i32 = arith.constant 0 : i32
    %c0_i32_0 = arith.constant 0 : i32
    %c0_i32_1 = arith.constant 0 : i32
    return %c0_i32, %c0_i32_0 : i32, i32
  }
  func.func @transform_5(%arg0: i32) -> (i32, i32, i32) {
    %c0_i32 = arith.constant 0 : i32
    %c0_i32_0 = arith.constant 0 : i32
    %c0_i32_1 = arith.constant 0 : i32
    return %arg0, %c0_i32, %c0_i32_0 : i32, i32, i32
  }
}

module attributes {stable_mosaic.version = 11 : i64} {
  func.func @bn_relu_kernel(%arg0: i32, %arg1: memref<1x64x8xf32, #tpu.memory_space<vmem>>, %arg2: memref<8x16xf32, #tpu.memory_space<vmem>>, %arg3: memref<16x8xf32, #tpu.memory_space<vmem>>, %arg4: memref<9x256xf32, #tpu.memory_space<vmem>>, %arg5: memref<8x72xf32, #tpu.memory_space<vmem>>, %arg6: memref<8x2xf32, #tpu.memory_space<vmem>>, %arg7: memref<1x8x256xf32, #tpu.memory_space<vmem>>) attributes {dimension_semantics = [#tpu.dimension_semantics<parallel>], iteration_bounds = array<i64: 2>, scalar_prefetch = 0 : i64, scratch_operands = 0 : i64, tpu.core_type = #tpu.core_type<tc>, window_params = [{transform_indices = @transform_0, window_bounds = array<i64: 1, 64, 8>}, {pipeline_mode = #tpu.pipeline_mode<synchronous>, transform_indices = @transform_1, window_bounds = array<i64: 8, 16>}, {pipeline_mode = #tpu.pipeline_mode<synchronous>, transform_indices = @transform_2, window_bounds = array<i64: 16, 8>}, {pipeline_mode = #tpu.pipeline_mode<synchronous>, transform_indices = @transform_3, window_bounds = array<i64: 9, 256>}, {pipeline_mode = #tpu.pipeline_mode<synchronous>, transform_indices = @transform_4, window_bounds = array<i64: 8, 72>}, {pipeline_mode = #tpu.pipeline_mode<synchronous>, transform_indices = @transform_5, window_bounds = array<i64: 8, 2>}, {transform_indices = @transform_6, window_bounds = array<i64: 1, 8, 256>}]} {
    %c0 = arith.constant 0 : index
    %c0_0 = arith.constant 0 : index
    %c0_1 = arith.constant 0 : index
    %0 = vector.load %arg1[%c0, %c0_0, %c0_1] : memref<1x64x8xf32, #tpu.memory_space<vmem>>, vector<1x64x8xf32>
    %1 = vector.shape_cast %0 : vector<1x64x8xf32> to vector<64x8xf32>
    %c0_2 = arith.constant 0 : index
    %c0_3 = arith.constant 0 : index
    %2 = vector.load %arg2[%c0_2, %c0_3] : memref<8x16xf32, #tpu.memory_space<vmem>>, vector<8x16xf32>
    %c0_4 = arith.constant 0 : index
    %c0_5 = arith.constant 0 : index
    %3 = vector.load %arg3[%c0_4, %c0_5] : memref<16x8xf32, #tpu.memory_space<vmem>>, vector<16x8xf32>
    %c0_6 = arith.constant 0 : index
    %c0_7 = arith.constant 0 : index
    %4 = vector.load %arg4[%c0_6, %c0_7] : memref<9x256xf32, #tpu.memory_space<vmem>>, vector<9x256xf32>
    %c0_8 = arith.constant 0 : index
    %c0_9 = arith.constant 0 : index
    %5 = vector.load %arg5[%c0_8, %c0_9] : memref<8x72xf32, #tpu.memory_space<vmem>>, vector<8x72xf32>
    %cst = arith.constant dense<0.000000e+00> : vector<64x16xf32>
    %6 = tpu.matmul %1, %2, %cst {dimension_numbers = #tpu.dot_dimension_numbers<[1], [0], [0], [1], [0, 0, 1, 1], [], []>} : vector<64x8xf32>, vector<8x16xf32>, vector<64x16xf32> -> vector<64x16xf32>
    %7 = vector.shape_cast %6 : vector<64x16xf32> to vector<8x8x16xf32>
    %8 = vector.shape_cast %3 : vector<16x8xf32> to vector<1x16x8xf32>
    %9 = vector.shape_cast %8 : vector<1x16x8xf32> to vector<1x16x8xf32>
    %10 = vector.broadcast %9 : vector<1x16x8xf32> to vector<8x16x8xf32>
    "tpu.trace_start"() <{level = 10 : i32, message = "coh,chw->cow"}> : () -> ()
    %cst_10 = arith.constant dense<0.000000e+00> : vector<8x16x16xf32>
    %11 = tpu.matmul %10, %7, %cst_10 {dimension_numbers = #tpu.dot_dimension_numbers<[2], [1], [1], [2], [0, 0, 0, 1, 1, 2], [0], [0]>} : vector<8x16x8xf32>, vector<8x8x16xf32>, vector<8x16x16xf32> -> vector<8x16x16xf32>
    "tpu.trace_stop"() : () -> ()
    %12 = vector.shape_cast %11 : vector<8x16x16xf32> to vector<8x256xf32>
    %13 = vector.extract_strided_slice %12 {offsets = [0, 239], sizes = [8, 17], strides = [1, 1]} : vector<8x256xf32> to vector<8x17xf32>
    %14 = vector.extract_strided_slice %12 {offsets = [0, 0], sizes = [8, 239], strides = [1, 1]} : vector<8x256xf32> to vector<8x239xf32>
    %15 = tpu.concatenate %13, %14 in 1 : vector<8x17xf32>, vector<8x239xf32> -> vector<8x256xf32>
    %16 = vector.extract_strided_slice %4 {offsets = [0, 0], sizes = [1, 256], strides = [1, 1]} : vector<9x256xf32> to vector<1x256xf32>
    %17 = vector.broadcast %16 : vector<1x256xf32> to vector<8x256xf32>
    %18 = arith.mulf %15, %17 : vector<8x256xf32>
    %19 = vector.extract_strided_slice %12 {offsets = [0, 240], sizes = [8, 16], strides = [1, 1]} : vector<8x256xf32> to vector<8x16xf32>
    %20 = vector.extract_strided_slice %12 {offsets = [0, 0], sizes = [8, 240], strides = [1, 1]} : vector<8x256xf32> to vector<8x240xf32>
    %21 = tpu.concatenate %19, %20 in 1 : vector<8x16xf32>, vector<8x240xf32> -> vector<8x256xf32>
    %22 = vector.extract_strided_slice %4 {offsets = [1, 0], sizes = [1, 256], strides = [1, 1]} : vector<9x256xf32> to vector<1x256xf32>
    %23 = vector.broadcast %22 : vector<1x256xf32> to vector<8x256xf32>
    %24 = arith.mulf %21, %23 : vector<8x256xf32>
    %25 = vector.extract_strided_slice %12 {offsets = [0, 241], sizes = [8, 15], strides = [1, 1]} : vector<8x256xf32> to vector<8x15xf32>
    %26 = vector.extract_strided_slice %12 {offsets = [0, 0], sizes = [8, 241], strides = [1, 1]} : vector<8x256xf32> to vector<8x241xf32>
    %27 = tpu.concatenate %25, %26 in 1 : vector<8x15xf32>, vector<8x241xf32> -> vector<8x256xf32>
    %28 = vector.extract_strided_slice %4 {offsets = [2, 0], sizes = [1, 256], strides = [1, 1]} : vector<9x256xf32> to vector<1x256xf32>
    %29 = vector.broadcast %28 : vector<1x256xf32> to vector<8x256xf32>
    %30 = arith.mulf %27, %29 : vector<8x256xf32>
    %31 = vector.extract_strided_slice %12 {offsets = [0, 255], sizes = [8, 1], strides = [1, 1]} : vector<8x256xf32> to vector<8x1xf32>
    %32 = vector.extract_strided_slice %12 {offsets = [0, 0], sizes = [8, 255], strides = [1, 1]} : vector<8x256xf32> to vector<8x255xf32>
    %33 = tpu.concatenate %31, %32 in 1 : vector<8x1xf32>, vector<8x255xf32> -> vector<8x256xf32>
    %34 = vector.extract_strided_slice %4 {offsets = [3, 0], sizes = [1, 256], strides = [1, 1]} : vector<9x256xf32> to vector<1x256xf32>
    %35 = vector.broadcast %34 : vector<1x256xf32> to vector<8x256xf32>
    %36 = arith.mulf %33, %35 : vector<8x256xf32>
    %37 = vector.extract_strided_slice %12 {offsets = [0, 1], sizes = [8, 255], strides = [1, 1]} : vector<8x256xf32> to vector<8x255xf32>
    %38 = vector.extract_strided_slice %12 {offsets = [0, 0], sizes = [8, 1], strides = [1, 1]} : vector<8x256xf32> to vector<8x1xf32>
    %39 = tpu.concatenate %37, %38 in 1 : vector<8x255xf32>, vector<8x1xf32> -> vector<8x256xf32>
    %40 = vector.extract_strided_slice %4 {offsets = [5, 0], sizes = [1, 256], strides = [1, 1]} : vector<9x256xf32> to vector<1x256xf32>
    %41 = vector.broadcast %40 : vector<1x256xf32> to vector<8x256xf32>
    %42 = arith.mulf %39, %41 : vector<8x256xf32>
    %43 = vector.extract_strided_slice %12 {offsets = [0, 15], sizes = [8, 241], strides = [1, 1]} : vector<8x256xf32> to vector<8x241xf32>
    %44 = vector.extract_strided_slice %12 {offsets = [0, 0], sizes = [8, 15], strides = [1, 1]} : vector<8x256xf32> to vector<8x15xf32>
    %45 = tpu.concatenate %43, %44 in 1 : vector<8x241xf32>, vector<8x15xf32> -> vector<8x256xf32>
    %46 = vector.extract_strided_slice %4 {offsets = [6, 0], sizes = [1, 256], strides = [1, 1]} : vector<9x256xf32> to vector<1x256xf32>
    %47 = vector.broadcast %46 : vector<1x256xf32> to vector<8x256xf32>
    %48 = arith.mulf %45, %47 : vector<8x256xf32>
    %49 = vector.extract_strided_slice %12 {offsets = [0, 16], sizes = [8, 240], strides = [1, 1]} : vector<8x256xf32> to vector<8x240xf32>
    %50 = vector.extract_strided_slice %12 {offsets = [0, 0], sizes = [8, 16], strides = [1, 1]} : vector<8x256xf32> to vector<8x16xf32>
    %51 = tpu.concatenate %49, %50 in 1 : vector<8x240xf32>, vector<8x16xf32> -> vector<8x256xf32>
    %52 = vector.extract_strided_slice %4 {offsets = [7, 0], sizes = [1, 256], strides = [1, 1]} : vector<9x256xf32> to vector<1x256xf32>
    %53 = vector.broadcast %52 : vector<1x256xf32> to vector<8x256xf32>
    %54 = arith.mulf %51, %53 : vector<8x256xf32>
    %55 = vector.extract_strided_slice %12 {offsets = [0, 17], sizes = [8, 239], strides = [1, 1]} : vector<8x256xf32> to vector<8x239xf32>
    %56 = vector.extract_strided_slice %12 {offsets = [0, 0], sizes = [8, 17], strides = [1, 1]} : vector<8x256xf32> to vector<8x17xf32>
    %57 = tpu.concatenate %55, %56 in 1 : vector<8x239xf32>, vector<8x17xf32> -> vector<8x256xf32>
    %58 = vector.extract_strided_slice %4 {offsets = [8, 0], sizes = [1, 256], strides = [1, 1]} : vector<9x256xf32> to vector<1x256xf32>
    %59 = vector.broadcast %58 : vector<1x256xf32> to vector<8x256xf32>
    %60 = arith.mulf %57, %59 : vector<8x256xf32>
    %61 = tpu.concatenate %18, %24, %30, %36, %12, %42, %48, %54, %60 in 0 : vector<8x256xf32>, vector<8x256xf32>, vector<8x256xf32>, vector<8x256xf32>, vector<8x256xf32>, vector<8x256xf32>, vector<8x256xf32>, vector<8x256xf32>, vector<8x256xf32> -> vector<72x256xf32>
    %cst_11 = arith.constant dense<0.000000e+00> : vector<8x256xf32>
    %62 = tpu.matmul %5, %61, %cst_11 {dimension_numbers = #tpu.dot_dimension_numbers<[1], [0], [0], [1], [0, 0, 1, 1], [], []>} : vector<8x72xf32>, vector<72x256xf32>, vector<8x256xf32> -> vector<8x256xf32>
    %c0_12 = arith.constant 0 : index
    %c0_13 = arith.constant 0 : index
    %63 = vector.load %arg6[%c0_12, %c0_13] : memref<8x2xf32, #tpu.memory_space<vmem>>, vector<8x2xf32>
    %64 = vector.extract_strided_slice %63 {offsets = [0, 0], sizes = [8, 1], strides = [1, 1]} : vector<8x2xf32> to vector<8x1xf32>
    %65 = vector.broadcast %64 : vector<8x1xf32> to vector<8x256xf32>
    %66 = arith.mulf %62, %65 : vector<8x256xf32>
    %67 = vector.extract_strided_slice %63 {offsets = [0, 1], sizes = [8, 1], strides = [1, 1]} : vector<8x2xf32> to vector<8x1xf32>
    %68 = vector.broadcast %67 : vector<8x1xf32> to vector<8x256xf32>
    %69 = arith.addf %66, %68 : vector<8x256xf32>
    %cst_14 = arith.constant 0.000000e+00 : f32
    %70 = vector.broadcast %cst_14 : f32 to vector<8x256xf32>
    %71 = arith.maximumf %69, %70 : vector<8x256xf32>
    %c0_15 = arith.constant 0 : index
    %c0_16 = arith.constant 0 : index
    %c0_17 = arith.constant 0 : index
    %72 = vector.load %arg7[%c0_15, %c0_16, %c0_17] : memref<1x8x256xf32, #tpu.memory_space<vmem>>, vector<1x8x256xf32>
    %73 = vector.shape_cast %72 : vector<1x8x256xf32> to vector<8x256xf32>
    %74 = vector.shape_cast %71 : vector<8x256xf32> to vector<1x8x256xf32>
    tpu.vector_store %arg7[%c0_15, %c0_16, %c0_17], %74 {strides = array<i32>} : memref<1x8x256xf32, #tpu.memory_space<vmem>>, vector<1x8x256xf32>,
    return
  }
  func.func @transform_0(%arg0: i32) -> (i32, i32, i32) {
    %c0_i32 = arith.constant 0 : i32
    %c0_i32_0 = arith.constant 0 : i32
    %c0_i32_1 = arith.constant 0 : i32
    return %arg0, %c0_i32, %c0_i32_0 : i32, i32, i32
  }
  func.func @transform_1(%arg0: i32) -> (i32, i32) {
    %c0_i32 = arith.constant 0 : i32
    %c0_i32_0 = arith.constant 0 : i32
    %c0_i32_1 = arith.constant 0 : i32
    return %c0_i32, %c0_i32_0 : i32, i32
  }
  func.func @transform_2(%arg0: i32) -> (i32, i32) {
    %c0_i32 = arith.constant 0 : i32
    %c0_i32_0 = arith.constant 0 : i32
    %c0_i32_1 = arith.constant 0 : i32
    return %c0_i32, %c0_i32_0 : i32, i32
  }
  func.func @transform_3(%arg0: i32) -> (i32, i32) {
    %c0_i32 = arith.constant 0 : i32
    %c0_i32_0 = arith.constant 0 : i32
    %c0_i32_1 = arith.constant 0 : i32
    return %c0_i32, %c0_i32_0 : i32, i32
  }
  func.func @transform_4(%arg0: i32) -> (i32, i32) {
    %c0_i32 = arith.constant 0 : i32
    %c0_i32_0 = arith.constant 0 : i32
    %c0_i32_1 = arith.constant 0 : i32
    return %c0_i32, %c0_i32_0 : i32, i32
  }
  func.func @transform_5(%arg0: i32) -> (i32, i32) {
    %c0_i32 = arith.constant 0 : i32
    %c0_i32_0 = arith.constant 0 : i32
    %c0_i32_1 = arith.constant 0 : i32
    return %c0_i32, %c0_i32_0 : i32, i32
  }
  func.func @transform_6(%arg0: i32) -> (i32, i32, i32) {
    %c0_i32 = arith.constant 0 : i32
    %c0_i32_0 = arith.constant 0 : i32
    %c0_i32_1 = arith.constant 0 : i32
    return %arg0, %c0_i32, %c0_i32_0 : i32, i32, i32
  }
}

</mosaic_0001>

<llo_original>
// kernel: up_conv_forward.3
$region0: #{up_conv_forward.3}
  #allocation0 [shape = 'u32[]', space=smem, size = 0x4, offset = 0x4, fixed_abs, tag = 'smem constant byte address 0x4 - core index']
  #allocation1 [shape = 'u32[72,128]{1,0:T(1,128)}', space=vmem, size = 0x9000, scoped, tag = 'internal scratch']
  %s0 = inlined_call_operand.vmem [shape: f32[2,64,8], index: 0, kind: input, shape index: {}]
  %s1 = inlined_call_operand.vmem [shape: f32[8,16], index: 1, kind: input, shape index: {}]
  %s2 = inlined_call_operand.vmem [shape: f32[16,8], index: 2, kind: input, shape index: {}]
  %s3 = inlined_call_operand.vmem [shape: f32[9,256], index: 3, kind: input, shape index: {}]
  %s4 = inlined_call_operand.vmem [shape: f32[8,72], index: 4, kind: input, shape index: {}]
  %s5 = inlined_call_operand.vmem [shape: f32[8,2], index: 5, kind: input, shape index: {}]
  %s6 = inlined_call_operand.vmem [shape: f32[2,8,256], index: 6, kind: output, shape index: {}]
  %s7 = sld [smem:[#allocation0]]
  $region57: #{up_conv_forward.3} parent=0
    _
  %s9 = ssub.s32 1, %s7
  %s10 = scalar_select 0, %s9, %s7
  loop: start=0, step=1, limit=4
  $region2: #{up_conv_forward.3} parent=0 // loop_pre_header
    _
  $region3: #{up_conv_forward.3} parent=0 // loop_header
    %s12 = sphi 0, %s16
    %p13 = scmp.ge.s32.totalorder %s12, 4
    %s22 = sphi 0, %s24
    %s25 = sphi 0, %s22
    %s26 = sphi 0, %s25
    %s42 = sphi 0, %s26
    %s46 = sphi 0, %s46
    %s48 = sphi 0, %s46
    %s49 = sphi 0, %s48
    %s63 = sphi 0, %s49
    %s67 = sphi 0, %s67
    %s69 = sphi 0, %s67
    %s70 = sphi 0, %s69
    %s84 = sphi 0, %s70
    %s88 = sphi 0, %s88
    %s90 = sphi 0, %s88
    %s91 = sphi 0, %s90
    %s105 = sphi 0, %s91
    %s109 = sphi 0, %s109
    %s111 = sphi 0, %s109
    %s112 = sphi 0, %s111
    %s126 = sphi 0, %s112
    %s130 = sphi 0, %s130
    %s132 = sphi 0, %s130
    %s133 = sphi 0, %s132
    %s147 = sphi 0, %s133
    %s153 = sphi 0, %s155
    %s156 = sphi 0, %s153
    %s157 = sphi 0, %s156
    %s173 = sphi 0, %s157
  $region4: #{up_conv_forward.3} parent=0 // loop_header_branch
    %15 = sbr.rel (%p13) target = $region8
  $region5: #{up_conv_forward.3} parent=0 // loop_body
    %s17 = ssub.s32 %s12, 1
    %s18 = ssub.s32 %s12, 2
    %s19 = sadd.s32 %s12, 1
    %s20 = ssub.s32 %s12, %s19
    %p21 = scmp.eq.s32.totalorder %s20, 0
    %s23 = sadd.s32 %s22, 1
    %s24 = scalar_select %p21, %s22, %s23
    %p27 = pneg %p21
    %p28 = scmp.eq.s32.totalorder %s12, 1
    %p29 = por %p27, %p28
    %p30 = scmp.ne.s32.totalorder %s22, %s25
    %p31 = scmp.eq.s32.totalorder %s12, 0
    %p32 = por %p30, %p31
    %p33 = scmp.ne.s32.totalorder %s22, %s25
    %p34 = scmp.eq.s32.totalorder %s17, 1
    %p35 = por %p33, %p34
    %p36 = scmp.ne.s32.totalorder %s25, %s26
    %p37 = scmp.eq.s32.totalorder %s17, 0
    %p38 = por %p36, %p37
    %p39 = scmp.ne.s32.totalorder %s25, %s26
    %p40 = scmp.eq.s32.totalorder %s18, 1
    %p41 = por %p39, %p40
    %p43 = scmp.ne.s32.totalorder %s26, %s42
    %p44 = scmp.eq.s32.totalorder %s18, 0
    %p45 = por %p43, %p44
    %s47 = sadd.s32 %s46, 1
    %p50 = scmp.eq.s32.totalorder %s12, 1
    %p51 = scmp.ne.s32.totalorder %s46, %s48
    %p52 = scmp.eq.s32.totalorder %s12, 0
    %p53 = por %p51, %p52
    %p54 = scmp.ne.s32.totalorder %s46, %s48
    %p55 = scmp.eq.s32.totalorder %s17, 1
    %p56 = por %p54, %p55
    %p57 = scmp.ne.s32.totalorder %s48, %s49
    %p58 = scmp.eq.s32.totalorder %s17, 0
    %p59 = por %p57, %p58
    %p60 = scmp.ne.s32.totalorder %s48, %s49
    %p61 = scmp.eq.s32.totalorder %s18, 1
    %p62 = por %p60, %p61
    %p64 = scmp.ne.s32.totalorder %s49, %s63
    %p65 = scmp.eq.s32.totalorder %s18, 0
    %p66 = por %p64, %p65
    %s68 = sadd.s32 %s67, 1
    %p71 = scmp.eq.s32.totalorder %s12, 1
    %p72 = scmp.ne.s32.totalorder %s67, %s69
    %p73 = scmp.eq.s32.totalorder %s12, 0
    %p74 = por %p72, %p73
    %p75 = scmp.ne.s32.totalorder %s67, %s69
    %p76 = scmp.eq.s32.totalorder %s17, 1
    %p77 = por %p75, %p76
    %p78 = scmp.ne.s32.totalorder %s69, %s70
    %p79 = scmp.eq.s32.totalorder %s17, 0
    %p80 = por %p78, %p79
    %p81 = scmp.ne.s32.totalorder %s69, %s70
    %p82 = scmp.eq.s32.totalorder %s18, 1
    %p83 = por %p81, %p82
    %p85 = scmp.ne.s32.totalorder %s70, %s84
    %p86 = scmp.eq.s32.totalorder %s18, 0
    %p87 = por %p85, %p86
    %s89 = sadd.s32 %s88, 1
    %p92 = scmp.eq.s32.totalorder %s12, 1
    %p93 = scmp.ne.s32.totalorder %s88, %s90
    %p94 = scmp.eq.s32.totalorder %s12, 0
    %p95 = por %p93, %p94
    %p96 = scmp.ne.s32.totalorder %s88, %s90
    %p97 = scmp.eq.s32.totalorder %s17, 1
    %p98 = por %p96, %p97
    %p99 = scmp.ne.s32.totalorder %s90, %s91
    %p100 = scmp.eq.s32.totalorder %s17, 0
    %p101 = por %p99, %p100
    %p102 = scmp.ne.s32.totalorder %s90, %s91
    %p103 = scmp.eq.s32.totalorder %s18, 1
    %p104 = por %p102, %p103
    %p106 = scmp.ne.s32.totalorder %s91, %s105
    %p107 = scmp.eq.s32.totalorder %s18, 0
    %p108 = por %p106, %p107
    %s110 = sadd.s32 %s109, 1
    %p113 = scmp.eq.s32.totalorder %s12, 1
    %p114 = scmp.ne.s32.totalorder %s109, %s111
    %p115 = scmp.eq.s32.totalorder %s12, 0
    %p116 = por %p114, %p115
    %p117 = scmp.ne.s32.totalorder %s109, %s111
    %p118 = scmp.eq.s32.totalorder %s17, 1
    %p119 = por %p117, %p118
    %p120 = scmp.ne.s32.totalorder %s111, %s112
    %p121 = scmp.eq.s32.totalorder %s17, 0
    %p122 = por %p120, %p121
    %p123 = scmp.ne.s32.totalorder %s111, %s112
    %p124 = scmp.eq.s32.totalorder %s18, 1
    %p125 = por %p123, %p124
    %p127 = scmp.ne.s32.totalorder %s112, %s126
    %p128 = scmp.eq.s32.totalorder %s18, 0
    %p129 = por %p127, %p128
    %s131 = sadd.s32 %s130, 1
    %p134 = scmp.eq.s32.totalorder %s12, 1
    %p135 = scmp.ne.s32.totalorder %s130, %s132
    %p136 = scmp.eq.s32.totalorder %s12, 0
    %p137 = por %p135, %p136
    %p138 = scmp.ne.s32.totalorder %s130, %s132
    %p139 = scmp.eq.s32.totalorder %s17, 1
    %p140 = por %p138, %p139
    %p141 = scmp.ne.s32.totalorder %s132, %s133
    %p142 = scmp.eq.s32.totalorder %s17, 0
    %p143 = por %p141, %p142
    %p144 = scmp.ne.s32.totalorder %s132, %s133
    %p145 = scmp.eq.s32.totalorder %s18, 1
    %p146 = por %p144, %p145
    %p148 = scmp.ne.s32.totalorder %s133, %s147
    %p149 = scmp.eq.s32.totalorder %s18, 0
    %p150 = por %p148, %p149
    %s151 = ssub.s32 %s12, %s19
    %p152 = scmp.eq.s32.totalorder %s151, 0
    %s154 = sadd.s32 %s153, 1
    %s155 = scalar_select %p152, %s153, %s154
    %p158 = pneg %p152
    %p159 = scmp.eq.s32.totalorder %s12, 1
    %p160 = por %p158, %p159
    %p161 = scmp.ne.s32.totalorder %s153, %s156
    %p162 = scmp.eq.s32.totalorder %s12, 0
    %p163 = por %p161, %p162
    %p164 = scmp.ne.s32.totalorder %s153, %s156
    %p165 = scmp.eq.s32.totalorder %s17, 1
    %p166 = por %p164, %p165
    %p167 = scmp.ne.s32.totalorder %s156, %s157
    %p168 = scmp.eq.s32.totalorder %s17, 0
    %p169 = por %p167, %p168
    %p170 = scmp.ne.s32.totalorder %s156, %s157
    %p171 = scmp.eq.s32.totalorder %s18, 1
    %p172 = por %p170, %p171
    %p174 = scmp.ne.s32.totalorder %s157, %s173
    %p175 = scmp.eq.s32.totalorder %s18, 0
    %p176 = por %p174, %p175
    %p177 = scmp.le.s32.totalorder 1, %s12
    %p178 = scmp.lt.s32.totalorder %s12, 3
    %p179 = pnand %p177, %p178
    %p180 = pneg %p179
    // Predicated region
    $region9: #{up_conv_forward.3} parent=5 // pred_check
      _
    $region10: #{up_conv_forward.3} parent=5 // pred_check_branch
      %182 = sbr.rel (%p179) target = $region12
    $region11: #{up_conv_forward.3} parent=5 // pred_region
      %s183 = ssub.s32 %s12, 1
      // Predicated region
      $region13: #{up_conv_forward.3} parent=11 // pred_check
        %p184 = pneg %p59
      $region14: #{up_conv_forward.3} parent=11 // pred_check_branch
        %186 = sbr.rel (%p184) target = $region16
      $region15: #{up_conv_forward.3} parent=11 // pred_region
        _
      $region16: #{up_conv_forward.3} parent=11 // pred_fallthru
        _
      // Predicated region
      $region17: #{up_conv_forward.3} parent=11 // pred_check
        %p187 = pneg %p80
      $region18: #{up_conv_forward.3} parent=11 // pred_check_branch
        %189 = sbr.rel (%p187) target = $region20
      $region19: #{up_conv_forward.3} parent=11 // pred_region
        _
      $region20: #{up_conv_forward.3} parent=11 // pred_fallthru
        _
      // Predicated region
      $region21: #{up_conv_forward.3} parent=11 // pred_check
        %p190 = pneg %p101
      $region22: #{up_conv_forward.3} parent=11 // pred_check_branch
        %192 = sbr.rel (%p190) target = $region24
      $region23: #{up_conv_forward.3} parent=11 // pred_region
        _
      $region24: #{up_conv_forward.3} parent=11 // pred_fallthru
        _
      // Predicated region
      $region25: #{up_conv_forward.3} parent=11 // pred_check
        %p193 = pneg %p122
      $region26: #{up_conv_forward.3} parent=11 // pred_check_branch
        %195 = sbr.rel (%p193) target = $region28
      $region27: #{up_conv_forward.3} parent=11 // pred_region
        _
      $region28: #{up_conv_forward.3} parent=11 // pred_fallthru
        _
      // Predicated region
      $region29: #{up_conv_forward.3} parent=11 // pred_check
        %p196 = pneg %p143
      $region30: #{up_conv_forward.3} parent=11 // pred_check_branch
        %198 = sbr.rel (%p196) target = $region32
      $region31: #{up_conv_forward.3} parent=11 // pred_region
        _
      $region32: #{up_conv_forward.3} parent=11 // pred_fallthru
        _
    $region12: #{up_conv_forward.3} parent=5 // pred_fallthru
      _
    %p199 = scmp.lt.s32.totalorder %s12, 2
    // Predicated region
    $region33: #{up_conv_forward.3} parent=5 // pred_check
      %p200 = pneg %p199
    $region34: #{up_conv_forward.3} parent=5 // pred_check_branch
      %202 = sbr.rel (%p200) target = $region36
    $region35: #{up_conv_forward.3} parent=5 // pred_region
      // Predicated region
      $region37: #{up_conv_forward.3} parent=35 // pred_check
        %p203 = pneg %p32
      $region38: #{up_conv_forward.3} parent=35 // pred_check_branch
        %205 = sbr.rel (%p203) target = $region40
      $region39: #{up_conv_forward.3} parent=35 // pred_region
        %p206 = scmp.lt.s32.totalorder %s12, 1
        %s207 = scalar_select %p206, %s12, 1
        %s208 = smul.addr %s207, 8
        %s209 = smul.addr %s208, 8
        %s210 = scalar_lea.vmem %s0, %s209
      $region40: #{up_conv_forward.3} parent=35 // pred_fallthru
        _
    $region36: #{up_conv_forward.3} parent=5 // pred_fallthru
      _
    %p211 = scmp.le.s32.totalorder 1, %s12
    %p212 = scmp.lt.s32.totalorder %s12, 3
    %p213 = pnand %p211, %p212
    %p214 = pneg %p213
    // Predicated region
    $region41: #{up_conv_forward.3} parent=5 // pred_check
      _
    $region42: #{up_conv_forward.3} parent=5 // pred_check_branch
      %216 = sbr.rel (%p213) target = $region44
    $region43: #{up_conv_forward.3} parent=5 // pred_region
      %s217 = ssub.s32 %s12, 1
      %p218 = scmp.lt.s32.totalorder %s17, 1
      %s219 = scalar_select %p218, %s17, 1
      %s220 = smul.addr %s219, 8
      %s221 = smul.addr %s220, 8
      %s222 = scalar_lea.vmem %s0, %s221
      %p223 = pneg %p38
      %p224 = pneg %p35
      %p225 = pneg %p59
      %p226 = pneg %p56
      %p227 = pneg %p80
      %p228 = pneg %p77
      %p229 = pneg %p101
      %p230 = pneg %p98
      %p231 = pneg %p122
      %p232 = pneg %p119
      %p233 = pneg %p143
      %p234 = pneg %p140
      %p235 = pneg %p169
      %p236 = pneg %p166
      %p237 = scmp.lt.s32.totalorder %s17, 1
      %s238 = scalar_select %p237, %s17, 1
      %s239 = smul.addr %s238, 2
      %s240 = smul.addr %s239, 8
      %s241 = scalar_lea.vmem %s6, %s240
      %p242 = scmp.lt.s32.totalorder %s17, 1
      %s243 = scalar_select %p242, %s17, 1
      %s244 = smul.addr %s243, 8
      %s245 = smul.addr %s244, 8
      %s246 = scalar_lea.vmem %s0, %s245
      %p247 = scmp.lt.s32.totalorder %s17, 1
      %s248 = scalar_select %p247, %s17, 1
      %s249 = smul.addr %s248, 2
      %s250 = smul.addr %s249, 8
      %s251 = scalar_lea.vmem %s6, %s250
      %v252 = vld [vmem:[%s246] sm:$0xff]
      %v253 = vld [vmem:[%s246 + $0x8] sm:$0xff]
      %v254 = vld [vmem:[%s246 + $0x10] sm:$0xff]
      %v255 = vld [vmem:[%s246 + $0x18] sm:$0xff]
      %v256 = vld [vmem:[%s246 + $0x20] sm:$0xff]
      %v257 = vld [vmem:[%s246 + $0x28] sm:$0xff]
      %v258 = vld [vmem:[%s246 + $0x30] sm:$0xff]
      %v259 = vld [vmem:[%s246 + $0x38] sm:$0xff]
      %v260 = vld [vmem:[%s1] sm:$0xff]
      %v261 = vld [vmem:[%s2] sm:$0xff]
      %v262 = vld [vmem:[%s2 + $0x8] sm:$0xff]
      %v263 = vld [vmem:[%s3] sm:$0xff]
      %v264 = vld [vmem:[%s3 + $0x8] sm:$0xff]
      %v265 = vld [vmem:[%s3 + $0x10] sm:$0x1]
      %v266 = vld [vmem:[%s3 + $0x18] sm:$0x1]
      %v267 = vld [vmem:[%s4] sm:$0xff]
      %vm268 = vcmask 64512
      %v270 = vsel %vm268, %v252, 0
      %v273 = vsel %vm268, %v253, 0
      %v276 = vsel %vm268, %v254, 0
      %v279 = vsel %vm268, %v255, 0
      %v282 = vsel %vm268, %v256, 0
      %v285 = vsel %vm268, %v257, 0
      %v288 = vsel %vm268, %v258, 0
      %v291 = vsel %vm268, %v259, 0
      %293 = vmatpush.msra.mxu0 0.0
      %294 = vmatpush.msra.mxu0 0.0
      %295 = vmatpush.msra.mxu0 0.0
      %296 = vmatpush.msra.mxu0 0.0
      %297 = vmatpush.msra.mxu0 0.0
      %298 = vmatpush.msra.mxu0 0.0
      %299 = vmatpush.msra.mxu0 0.0
      %300 = vmatpush.msra.mxu0 0.0
      %301 = vmatpush.msra.mxu0 0.0
      %302 = vmatpush.msra.mxu0 0.0
      %303 = vmatpush.msra.mxu0 0.0
      %304 = vmatpush.msra.mxu0 0.0
      %305 = vmatpush.msra.mxu0 0.0
      %306 = vmatpush.msra.mxu0 0.0
      %307 = vmatpush.msra.mxu0 0.0
      %308 = vmatpush.msra.mxu0 %v260
      %309 = vmatmul.f32.gmra.mxu0 %v270
      %v310 = vpop.f32.mrf.mxu0
      %v311 = vadd.f32 0.0, %v310
      %312 = vmatmul.f32.gmra.mxu0 %v273
      %v313 = vpop.f32.mrf.mxu0
      %v314 = vadd.f32 0.0, %v313
      %315 = vmatmul.f32.gmra.mxu0 %v276
      %v316 = vpop.f32.mrf.mxu0
      %v317 = vadd.f32 0.0, %v316
      %318 = vmatmul.f32.gmra.mxu0 %v279
      %v319 = vpop.f32.mrf.mxu0
      %v320 = vadd.f32 0.0, %v319
      %321 = vmatmul.f32.gmra.mxu0 %v282
      %v322 = vpop.f32.mrf.mxu0
      %v323 = vadd.f32 0.0, %v322
      %324 = vmatmul.f32.gmra.mxu0 %v285
      %v325 = vpop.f32.mrf.mxu0
      %v326 = vadd.f32 0.0, %v325
      %327 = vmatmul.f32.gmra.mxu0 %v288
      %v328 = vpop.f32.mrf.mxu0
      %v329 = vadd.f32 0.0, %v328
      %330 = vmatmul.f32.gmra.mxu0 %v291
      %v331 = vpop.f32.mrf.mxu0
      %v332 = vadd.f32 0.0, %v331
      %333 = vdwg.mxu0
      %v335 = vsel %vm268, %v261, 0
      %v338 = vsel %vm268, %v262, 0
      %340 = vmatpush.msra.mxu0 0.0
      %341 = vmatpush.msra.mxu0 0.0
      %342 = vmatpush.msra.mxu0 0.0
      %343 = vmatpush.msra.mxu0 0.0
      %344 = vmatpush.msra.mxu0 0.0
      %345 = vmatpush.msra.mxu0 0.0
      %346 = vmatpush.msra.mxu0 0.0
      %347 = vmatpush.msra.mxu0 0.0
      %348 = vmatpush.msra.mxu0 0.0
      %349 = vmatpush.msra.mxu0 0.0
      %350 = vmatpush.msra.mxu0 0.0
      %351 = vmatpush.msra.mxu0 0.0
      %352 = vmatpush.msra.mxu0 0.0
      %353 = vmatpush.msra.mxu0 0.0
      %354 = vmatpush.msra.mxu0 0.0
      %355 = vmatpush.msra.mxu0 %v311
      %356 = vmatmul.f32.gmra.mxu0 %v335
      %v357 = vpop.f32.mrf.mxu0
      %v358 = vadd.f32 0.0, %v357
      %359 = vmatmul.f32.gmra.mxu0 %v338
      %v360 = vpop.f32.mrf.mxu0
      %v361 = vadd.f32 0.0, %v360
      %362 = vdwg.mxu0
      %363 = vmatpush.msra.mxu0 0.0
      %364 = vmatpush.msra.mxu0 0.0
      %365 = vmatpush.msra.mxu0 0.0
      %366 = vmatpush.msra.mxu0 0.0
      %367 = vmatpush.msra.mxu0 0.0
      %368 = vmatpush.msra.mxu0 0.0
      %369 = vmatpush.msra.mxu0 0.0
      %370 = vmatpush.msra.mxu0 0.0
      %371 = vmatpush.msra.mxu0 0.0
      %372 = vmatpush.msra.mxu0 0.0
      %373 = vmatpush.msra.mxu0 0.0
      %374 = vmatpush.msra.mxu0 0.0
      %375 = vmatpush.msra.mxu0 0.0
      %376 = vmatpush.msra.mxu0 0.0
      %377 = vmatpush.msra.mxu0 0.0
      %378 = vmatpush.msra.mxu0 %v314
      %379 = vmatmul.f32.gmra.mxu0 %v335
      %v380 = vpop.f32.mrf.mxu0
      %v381 = vadd.f32 0.0, %v380
      %382 = vmatmul.f32.gmra.mxu0 %v338
      %v383 = vpop.f32.mrf.mxu0
      %v384 = vadd.f32 0.0, %v383
      %385 = vdwg.mxu0
      %386 = vmatpush.msra.mxu0 0.0
      %387 = vmatpush.msra.mxu0 0.0
      %388 = vmatpush.msra.mxu0 0.0
      %389 = vmatpush.msra.mxu0 0.0
      %390 = vmatpush.msra.mxu0 0.0
      %391 = vmatpush.msra.mxu0 0.0
      %392 = vmatpush.msra.mxu0 0.0
      %393 = vmatpush.msra.mxu0 0.0
      %394 = vmatpush.msra.mxu0 0.0
      %395 = vmatpush.msra.mxu0 0.0
      %396 = vmatpush.msra.mxu0 0.0
      %397 = vmatpush.msra.mxu0 0.0
      %398 = vmatpush.msra.mxu0 0.0
      %399 = vmatpush.msra.mxu0 0.0
      %400 = vmatpush.msra.mxu0 0.0
      %401 = vmatpush.msra.mxu0 %v317
      %402 = vmatmul.f32.gmra.mxu0 %v335
      %v403 = vpop.f32.mrf.mxu0
      %v404 = vadd.f32 0.0, %v403
      %405 = vmatmul.f32.gmra.mxu0 %v338
      %v406 = vpop.f32.mrf.mxu0
      %v407 = vadd.f32 0.0, %v406
      %408 = vdwg.mxu0
      %409 = vmatpush.msra.mxu0 0.0
      %410 = vmatpush.msra.mxu0 0.0
      %411 = vmatpush.msra.mxu0 0.0
      %412 = vmatpush.msra.mxu0 0.0
      %413 = vmatpush.msra.mxu0 0.0
      %414 = vmatpush.msra.mxu0 0.0
      %415 = vmatpush.msra.mxu0 0.0
      %416 = vmatpush.msra.mxu0 0.0
      %417 = vmatpush.msra.mxu0 0.0
      %418 = vmatpush.msra.mxu0 0.0
      %419 = vmatpush.msra.mxu0 0.0
      %420 = vmatpush.msra.mxu0 0.0
      %421 = vmatpush.msra.mxu0 0.0
      %422 = vmatpush.msra.mxu0 0.0
      %423 = vmatpush.msra.mxu0 0.0
      %424 = vmatpush.msra.mxu0 %v320
      %425 = vmatmul.f32.gmra.mxu0 %v335
      %v426 = vpop.f32.mrf.mxu0
      %v427 = vadd.f32 0.0, %v426
      %428 = vmatmul.f32.gmra.mxu0 %v338
      %v429 = vpop.f32.mrf.mxu0
      %v430 = vadd.f32 0.0, %v429
      %431 = vdwg.mxu0
      %432 = vmatpush.msra.mxu0 0.0
      %433 = vmatpush.msra.mxu0 0.0
      %434 = vmatpush.msra.mxu0 0.0
      %435 = vmatpush.msra.mxu0 0.0
      %436 = vmatpush.msra.mxu0 0.0
      %437 = vmatpush.msra.mxu0 0.0
      %438 = vmatpush.msra.mxu0 0.0
      %439 = vmatpush.msra.mxu0 0.0
      %440 = vmatpush.msra.mxu0 0.0
      %441 = vmatpush.msra.mxu0 0.0
      %442 = vmatpush.msra.mxu0 0.0
      %443 = vmatpush.msra.mxu0 0.0
      %444 = vmatpush.msra.mxu0 0.0
      %445 = vmatpush.msra.mxu0 0.0
      %446 = vmatpush.msra.mxu0 0.0
      %447 = vmatpush.msra.mxu0 %v323
      %448 = vmatmul.f32.gmra.mxu0 %v335
      %v449 = vpop.f32.mrf.mxu0
      %v450 = vadd.f32 0.0, %v449
      %451 = vmatmul.f32.gmra.mxu0 %v338
      %v452 = vpop.f32.mrf.mxu0
      %v453 = vadd.f32 0.0, %v452
      %454 = vdwg.mxu0
      %455 = vmatpush.msra.mxu0 0.0
      %456 = vmatpush.msra.mxu0 0.0
      %457 = vmatpush.msra.mxu0 0.0
      %458 = vmatpush.msra.mxu0 0.0
      %459 = vmatpush.msra.mxu0 0.0
      %460 = vmatpush.msra.mxu0 0.0
      %461 = vmatpush.msra.mxu0 0.0
      %462 = vmatpush.msra.mxu0 0.0
      %463 = vmatpush.msra.mxu0 0.0
      %464 = vmatpush.msra.mxu0 0.0
      %465 = vmatpush.msra.mxu0 0.0
      %466 = vmatpush.msra.mxu0 0.0
      %467 = vmatpush.msra.mxu0 0.0
      %468 = vmatpush.msra.mxu0 0.0
      %469 = vmatpush.msra.mxu0 0.0
      %470 = vmatpush.msra.mxu0 %v326
      %471 = vmatmul.f32.gmra.mxu0 %v335
      %v472 = vpop.f32.mrf.mxu0
      %v473 = vadd.f32 0.0, %v472
      %474 = vmatmul.f32.gmra.mxu0 %v338
      %v475 = vpop.f32.mrf.mxu0
      %v476 = vadd.f32 0.0, %v475
      %477 = vdwg.mxu0
      %478 = vmatpush.msra.mxu0 0.0
      %479 = vmatpush.msra.mxu0 0.0
      %480 = vmatpush.msra.mxu0 0.0
      %481 = vmatpush.msra.mxu0 0.0
      %482 = vmatpush.msra.mxu0 0.0
      %483 = vmatpush.msra.mxu0 0.0
      %484 = vmatpush.msra.mxu0 0.0
      %485 = vmatpush.msra.mxu0 0.0
      %486 = vmatpush.msra.mxu0 0.0
      %487 = vmatpush.msra.mxu0 0.0
      %488 = vmatpush.msra.mxu0 0.0
      %489 = vmatpush.msra.mxu0 0.0
      %490 = vmatpush.msra.mxu0 0.0
      %491 = vmatpush.msra.mxu0 0.0
      %492 = vmatpush.msra.mxu0 0.0
      %493 = vmatpush.msra.mxu0 %v329
      %494 = vmatmul.f32.gmra.mxu0 %v335
      %v495 = vpop.f32.mrf.mxu0
      %v496 = vadd.f32 0.0, %v495
      %497 = vmatmul.f32.gmra.mxu0 %v338
      %v498 = vpop.f32.mrf.mxu0
      %v499 = vadd.f32 0.0, %v498
      %500 = vdwg.mxu0
      %501 = vmatpush.msra.mxu0 0.0
      %502 = vmatpush.msra.mxu0 0.0
      %503 = vmatpush.msra.mxu0 0.0
      %504 = vmatpush.msra.mxu0 0.0
      %505 = vmatpush.msra.mxu0 0.0
      %506 = vmatpush.msra.mxu0 0.0
      %507 = vmatpush.msra.mxu0 0.0
      %508 = vmatpush.msra.mxu0 0.0
      %509 = vmatpush.msra.mxu0 0.0
      %510 = vmatpush.msra.mxu0 0.0
      %511 = vmatpush.msra.mxu0 0.0
      %512 = vmatpush.msra.mxu0 0.0
      %513 = vmatpush.msra.mxu0 0.0
      %514 = vmatpush.msra.mxu0 0.0
      %515 = vmatpush.msra.mxu0 0.0
      %516 = vmatpush.msra.mxu0 %v332
      %517 = vmatmul.f32.gmra.mxu0 %v335
      %v518 = vpop.f32.mrf.mxu0
      %v519 = vadd.f32 0.0, %v518
      %520 = vmatmul.f32.gmra.mxu0 %v338
      %v521 = vpop.f32.mrf.mxu0
      %v522 = vadd.f32 0.0, %v521
      %523 = vdwg.mxu0
      %v524 = vrot.slane %v404, 4
      %vm525 = vcmask 1047556
      %v526 = vsel %vm525, %v524, %v358
      %v527 = vrot.slane %v358, 4
      %v528 = vsel %vm525, %v404, %v527
      %v530 = vunpack.c.l.s4 1983009808
      %v531 = vunpack.c.0.s8 %v530
      %v532 = vperm.slane %v526, %v531
      %v534 = vunpack.c.l.s4 1983009808
      %v535 = vunpack.c.0.s8 %v534
      %v536 = vperm.slane %v528, %v535
      %v537 = vrot.slane %v427, 4
      %v538 = vsel %vm525, %v537, %v381
      %v539 = vrot.slane %v381, 4
      %v540 = vsel %vm525, %v427, %v539
      %v542 = vunpack.c.l.s4 1983009808
      %v543 = vunpack.c.0.s8 %v542
      %v544 = vperm.slane %v538, %v543
      %v546 = vunpack.c.l.s4 1983009808
      %v547 = vunpack.c.0.s8 %v546
      %v548 = vperm.slane %v540, %v547
      %v549 = vrot.slane %v496, 4
      %v550 = vsel %vm525, %v549, %v450
      %v551 = vrot.slane %v450, 4
      %v552 = vsel %vm525, %v496, %v551
      %v554 = vunpack.c.l.s4 1983009808
      %v555 = vunpack.c.0.s8 %v554
      %v556 = vperm.slane %v550, %v555
      %v558 = vunpack.c.l.s4 1983009808
      %v559 = vunpack.c.0.s8 %v558
      %v560 = vperm.slane %v552, %v559
      %v561 = vrot.slane %v519, 4
      %v562 = vsel %vm525, %v561, %v473
      %v563 = vrot.slane %v473, 4
      %v564 = vsel %vm525, %v519, %v563
      %v566 = vunpack.c.l.s4 1983009808
      %v567 = vunpack.c.0.s8 %v566
      %v568 = vperm.slane %v562, %v567
      %v570 = vunpack.c.l.s4 1983009808
      %v571 = vunpack.c.0.s8 %v570
      %v572 = vperm.slane %v564, %v571
      %v573 = vrot.slane %v544, 4
      %v574 = vsel %vm525, %v573, %v532
      %v575 = vrot.slane %v532, 4
      %v576 = vsel %vm525, %v544, %v575
      %v578 = vunpack.c.l.s4 1934713408
      %v579 = vunpack.c.0.s8 %v578
      %v580 = vperm.slane %v574, %v579
      %v582 = vunpack.c.l.s4 1934713408
      %v583 = vunpack.c.0.s8 %v582
      %v584 = vperm.slane %v576, %v583
      %v585 = vrot.slane %v548, 4
      %v586 = vsel %vm525, %v585, %v536
      %v587 = vrot.slane %v536, 4
      %v588 = vsel %vm525, %v548, %v587
      %v590 = vunpack.c.l.s4 1934713408
      %v591 = vunpack.c.0.s8 %v590
      %v592 = vperm.slane %v586, %v591
      %v594 = vunpack.c.l.s4 1934713408
      %v595 = vunpack.c.0.s8 %v594
      %v596 = vperm.slane %v588, %v595
      %v597 = vrot.slane %v568, 4
      %v598 = vsel %vm525, %v597, %v556
      %v599 = vrot.slane %v556, 4
      %v600 = vsel %vm525, %v568, %v599
      %v602 = vunpack.c.l.s4 1934713408
      %v603 = vunpack.c.0.s8 %v602
      %v604 = vperm.slane %v598, %v603
      %v606 = vunpack.c.l.s4 1934713408
      %v607 = vunpack.c.0.s8 %v606
      %v608 = vperm.slane %v600, %v607
      %v609 = vrot.slane %v572, 4
      %v610 = vsel %vm525, %v609, %v560
      %v611 = vrot.slane %v560, 4
      %v612 = vsel %vm525, %v572, %v611
      %v614 = vunpack.c.l.s4 1934713408
      %v615 = vunpack.c.0.s8 %v614
      %v616 = vperm.slane %v610, %v615
      %v618 = vunpack.c.l.s4 1934713408
      %v619 = vunpack.c.0.s8 %v618
      %v620 = vperm.slane %v612, %v619
      %v621 = vrot.slane %v604, 4
      %v622 = vsel %vm525, %v621, %v580
      %v623 = vrot.slane %v580, 4
      %v624 = vsel %vm525, %v604, %v623
      %v625 = vrot.slane %v608, 4
      %v626 = vsel %vm525, %v625, %v584
      %v627 = vrot.slane %v584, 4
      %v628 = vsel %vm525, %v608, %v627
      %v629 = vrot.slane %v616, 4
      %v630 = vsel %vm525, %v629, %v592
      %v631 = vrot.slane %v592, 4
      %v632 = vsel %vm525, %v616, %v631
      %v633 = vrot.slane %v620, 4
      %v634 = vsel %vm525, %v633, %v596
      %v635 = vrot.slane %v596, 4
      %v636 = vsel %vm525, %v620, %v635
      %v637 = vrot.slane %v407, 4
      %v638 = vsel %vm525, %v637, %v361
      %v639 = vrot.slane %v361, 4
      %v640 = vsel %vm525, %v407, %v639
      %v642 = vunpack.c.l.s4 1983009808
      %v643 = vunpack.c.0.s8 %v642
      %v644 = vperm.slane %v638, %v643
      %v646 = vunpack.c.l.s4 1983009808
      %v647 = vunpack.c.0.s8 %v646
      %v648 = vperm.slane %v640, %v647
      %v649 = vrot.slane %v430, 4
      %v650 = vsel %vm525, %v649, %v384
      %v651 = vrot.slane %v384, 4
      %v652 = vsel %vm525, %v430, %v651
      %v654 = vunpack.c.l.s4 1983009808
      %v655 = vunpack.c.0.s8 %v654
      %v656 = vperm.slane %v650, %v655
      %v658 = vunpack.c.l.s4 1983009808
      %v659 = vunpack.c.0.s8 %v658
      %v660 = vperm.slane %v652, %v659
      %v661 = vrot.slane %v499, 4
      %v662 = vsel %vm525, %v661, %v453
      %v663 = vrot.slane %v453, 4
      %v664 = vsel %vm525, %v499, %v663
      %v666 = vunpack.c.l.s4 1983009808
      %v667 = vunpack.c.0.s8 %v666
      %v668 = vperm.slane %v662, %v667
      %v670 = vunpack.c.l.s4 1983009808
      %v671 = vunpack.c.0.s8 %v670
      %v672 = vperm.slane %v664, %v671
      %v673 = vrot.slane %v522, 4
      %v674 = vsel %vm525, %v673, %v476
      %v675 = vrot.slane %v476, 4
      %v676 = vsel %vm525, %v522, %v675
      %v678 = vunpack.c.l.s4 1983009808
      %v679 = vunpack.c.0.s8 %v678
      %v680 = vperm.slane %v674, %v679
      %v682 = vunpack.c.l.s4 1983009808
      %v683 = vunpack.c.0.s8 %v682
      %v684 = vperm.slane %v676, %v683
      %v685 = vrot.slane %v656, 4
      %v686 = vsel %vm525, %v685, %v644
      %v687 = vrot.slane %v644, 4
      %v688 = vsel %vm525, %v656, %v687
      %v690 = vunpack.c.l.s4 1934713408
      %v691 = vunpack.c.0.s8 %v690
      %v692 = vperm.slane %v686, %v691
      %v694 = vunpack.c.l.s4 1934713408
      %v695 = vunpack.c.0.s8 %v694
      %v696 = vperm.slane %v688, %v695
      %v697 = vrot.slane %v660, 4
      %v698 = vsel %vm525, %v697, %v648
      %v699 = vrot.slane %v648, 4
      %v700 = vsel %vm525, %v660, %v699
      %v702 = vunpack.c.l.s4 1934713408
      %v703 = vunpack.c.0.s8 %v702
      %v704 = vperm.slane %v698, %v703
      %v706 = vunpack.c.l.s4 1934713408
      %v707 = vunpack.c.0.s8 %v706
      %v708 = vperm.slane %v700, %v707
      %v709 = vrot.slane %v680, 4
      %v710 = vsel %vm525, %v709, %v668
      %v711 = vrot.slane %v668, 4
      %v712 = vsel %vm525, %v680, %v711
      %v714 = vunpack.c.l.s4 1934713408
      %v715 = vunpack.c.0.s8 %v714
      %v716 = vperm.slane %v710, %v715
      %v718 = vunpack.c.l.s4 1934713408
      %v719 = vunpack.c.0.s8 %v718
      %v720 = vperm.slane %v712, %v719
      %v721 = vrot.slane %v684, 4
      %v722 = vsel %vm525, %v721, %v672
      %v723 = vrot.slane %v672, 4
      %v724 = vsel %vm525, %v684, %v723
      %v726 = vunpack.c.l.s4 1934713408
      %v727 = vunpack.c.0.s8 %v726
      %v728 = vperm.slane %v722, %v727
      %v730 = vunpack.c.l.s4 1934713408
      %v731 = vunpack.c.0.s8 %v730
      %v732 = vperm.slane %v724, %v731
      %v733 = vrot.slane %v716, 4
      %v734 = vsel %vm525, %v733, %v692
      %v735 = vrot.slane %v692, 4
      %v736 = vsel %vm525, %v716, %v735
      %v737 = vrot.slane %v720, 4
      %v738 = vsel %vm525, %v737, %v696
      %v739 = vrot.slane %v696, 4
      %v740 = vsel %vm525, %v720, %v739
      %v741 = vrot.slane %v728, 4
      %v742 = vsel %vm525, %v741, %v704
      %v743 = vrot.slane %v704, 4
      %v744 = vsel %vm525, %v728, %v743
      %v745 = vrot.slane %v732, 4
      %v746 = vsel %vm525, %v745, %v708
      %v747 = vrot.slane %v708, 4
      %v748 = vsel %vm525, %v732, %v747
      %750 = vrot.lane.b32.xlu0 %v624, 16
      %v751 = vpop.permute.xlu0 %750
      %754 = vrot.lane.b32.xlu0 %v626, 32
      %v755 = vpop.permute.xlu0 %754
      %758 = vrot.lane.b32.xlu0 %v628, 48
      %v759 = vpop.permute.xlu0 %758
      %762 = vrot.lane.b32.xlu0 %v630, 64
      %v763 = vpop.permute.xlu0 %762
      %766 = vrot.lane.b32.xlu0 %v632, 80
      %v767 = vpop.permute.xlu0 %766
      %770 = vrot.lane.b32.xlu0 %v634, 96
      %v771 = vpop.permute.xlu0 %770
      %774 = vrot.lane.b32.xlu0 %v636, 112
      %v775 = vpop.permute.xlu0 %774
      %778 = vrot.lane.b32.xlu0 %v736, 16
      %v779 = vpop.permute.xlu0 %778
      %782 = vrot.lane.b32.xlu0 %v738, 32
      %v783 = vpop.permute.xlu0 %782
      %786 = vrot.lane.b32.xlu0 %v740, 48
      %v787 = vpop.permute.xlu0 %786
      %790 = vrot.lane.b32.xlu0 %v742, 64
      %v791 = vpop.permute.xlu0 %790
      %794 = vrot.lane.b32.xlu0 %v744, 80
      %v795 = vpop.permute.xlu0 %794
      %798 = vrot.lane.b32.xlu0 %v746, 96
      %v799 = vpop.permute.xlu0 %798
      %802 = vrot.lane.b32.xlu0 %v748, 112
      %v803 = vpop.permute.xlu0 %802
      %vm805 = vcmask 130048
      %v806 = vsel %vm805, %v622, %v751
      %vm807 = vcmask 261120
      %v808 = vsel %vm807, %v806, %v755
      %vm809 = vcmask 392192
      %v810 = vsel %vm809, %v808, %v759
      %vm811 = vcmask 523264
      %v812 = vsel %vm811, %v810, %v763
      %vm813 = vcmask 654336
      %v814 = vsel %vm813, %v812, %v767
      %vm815 = vcmask 785408
      %v816 = vsel %vm815, %v814, %v771
      %vm817 = vcmask 916480
      %v818 = vsel %vm817, %v816, %v775
      %v819 = vsel %vm805, %v734, %v779
      %v820 = vsel %vm807, %v819, %v783
      %v821 = vsel %vm809, %v820, %v787
      %v822 = vsel %vm811, %v821, %v791
      %v823 = vsel %vm813, %v822, %v795
      %v824 = vsel %vm815, %v823, %v799
      %v825 = vsel %vm817, %v824, %v803
      %827 = vrot.lane.b32.xlu0 %v825, 17
      %v828 = vpop.permute.xlu0 %827
      %831 = vrot.lane.b32.xlu0 %v818, 17
      %v832 = vpop.permute.xlu0 %831
      %vm833 = vcmask 138240
      %v834 = vsel %vm833, %v832, %v828
      %v837 = vsel %vm833, %v828, %v832
      %v838 = vperm.slane %v263, 0
      %v839 = vperm.slane %v264, 0
      %v840 = vmul.f32 %v837, %v838
      %v841 = vmul.f32 %v834, %v839
      %842 = vrot.lane.b32.xlu0 %v825, 16
      %v843 = vpop.permute.xlu0 %842
      %845 = vrot.lane.b32.xlu0 %v818, 16
      %v846 = vpop.permute.xlu0 %845
      %v847 = vsel %vm805, %v846, %v843
      %v850 = vsel %vm805, %v843, %v846
      %v851 = vperm.slane %v263, 1
      %v852 = vperm.slane %v264, 1
      %v853 = vmul.f32 %v850, %v851
      %v854 = vmul.f32 %v847, %v852
      %855 = vrot.lane.b32.xlu0 %v825, 15
      %v856 = vpop.permute.xlu0 %855
      %858 = vrot.lane.b32.xlu0 %v818, 15
      %v859 = vpop.permute.xlu0 %858
      %vm860 = vcmask 121856
      %v861 = vsel %vm860, %v859, %v856
      %v864 = vsel %vm860, %v856, %v859
      %v865 = vperm.slane %v263, 2
      %v866 = vperm.slane %v264, 2
      %v867 = vmul.f32 %v864, %v865
      %v868 = vmul.f32 %v861, %v866
      %869 = vrot.lane.b32.xlu0 %v825, 1
      %v870 = vpop.permute.xlu0 %869
      %872 = vrot.lane.b32.xlu0 %v818, 1
      %v873 = vpop.permute.xlu0 %872
      %vm874 = vcmask 7168
      %v875 = vsel %vm874, %v873, %v870
      %v878 = vsel %vm874, %v870, %v873
      %v879 = vperm.slane %v263, 3
      %v880 = vperm.slane %v264, 3
      %v881 = vmul.f32 %v878, %v879
      %v882 = vmul.f32 %v875, %v880
      %883 = vrot.lane.b32.xlu0 %v818, 127
      %v884 = vpop.permute.xlu0 %883
      %885 = vrot.lane.b32.xlu0 %v825, 127
      %v886 = vpop.permute.xlu0 %885
      %vm887 = vcmask 1039360
      %v888 = vsel %vm887, %v884, %v886
      %v892 = vsel %vm887, %v886, %v884
      %v893 = vperm.slane %v263, 5
      %v894 = vperm.slane %v264, 5
      %v895 = vmul.f32 %v888, %v893
      %v896 = vmul.f32 %v892, %v894
      %897 = vrot.lane.b32.xlu0 %v818, 113
      %v898 = vpop.permute.xlu0 %897
      %899 = vrot.lane.b32.xlu0 %v825, 113
      %v900 = vpop.permute.xlu0 %899
      %vm901 = vcmask 924672
      %v902 = vsel %vm901, %v898, %v900
      %v906 = vsel %vm901, %v900, %v898
      %v907 = vperm.slane %v263, 6
      %v908 = vperm.slane %v264, 6
      %v909 = vmul.f32 %v902, %v907
      %v910 = vmul.f32 %v906, %v908
      %911 = vrot.lane.b32.xlu0 %v818, 112
      %v912 = vpop.permute.xlu0 %911
      %913 = vrot.lane.b32.xlu0 %v825, 112
      %v914 = vpop.permute.xlu0 %913
      %v915 = vsel %vm817, %v912, %v914
      %v919 = vsel %vm817, %v914, %v912
      %v920 = vperm.slane %v263, 7
      %v921 = vperm.slane %v264, 7
      %v922 = vmul.f32 %v915, %v920
      %v923 = vmul.f32 %v919, %v921
      %924 = vrot.lane.b32.xlu0 %v818, 111
      %v925 = vpop.permute.xlu0 %924
      %926 = vrot.lane.b32.xlu0 %v825, 111
      %v927 = vpop.permute.xlu0 %926
      %vm928 = vcmask 908288
      %v929 = vsel %vm928, %v925, %v927
      %v933 = vsel %vm928, %v927, %v925
      %v934 = vperm.slane %v265, 0
      %v935 = vperm.slane %v266, 0
      %v936 = vmul.f32 %v929, %v934
      %v937 = vmul.f32 %v933, %v935
      %vm938 = vcmask 588800
      %v940 = vsel %vm938, %v267, 0
      %942 = vmatpush.msra.mxu0 0.0
      %943 = vmatpush.msra.mxu0 0.0
      %944 = vmatpush.msra.mxu0 0.0
      %945 = vmatpush.msra.mxu0 0.0
      %946 = vmatpush.msra.mxu0 0.0
      %947 = vmatpush.msra.mxu0 0.0
      %948 = vmatpush.msra.mxu0 0.0
      %949 = vmatpush.msra.mxu0 %v936
      %950 = vmatpush.msra.mxu0 %v922
      %951 = vmatpush.msra.mxu0 %v909
      %952 = vmatpush.msra.mxu0 %v895
      %953 = vmatpush.msra.mxu0 %v818
      %954 = vmatpush.msra.mxu0 %v881
      %955 = vmatpush.msra.mxu0 %v867
      %956 = vmatpush.msra.mxu0 %v853
      %957 = vmatpush.msra.mxu0 %v840
      %958 = vmatmul.f32.gmra.mxu0 %v940
      %v959 = vpop.f32.mrf.mxu0
      %v960 = vadd.f32 0.0, %v959
      %961 = vdwg.mxu0
      %962 = vmatpush.msra.mxu0 0.0
      %963 = vmatpush.msra.mxu0 0.0
      %964 = vmatpush.msra.mxu0 0.0
      %965 = vmatpush.msra.mxu0 0.0
      %966 = vmatpush.msra.mxu0 0.0
      %967 = vmatpush.msra.mxu0 0.0
      %968 = vmatpush.msra.mxu0 0.0
      %969 = vmatpush.msra.mxu0 %v937
      %970 = vmatpush.msra.mxu0 %v923
      %971 = vmatpush.msra.mxu0 %v910
      %972 = vmatpush.msra.mxu0 %v896
      %973 = vmatpush.msra.mxu0 %v825
      %974 = vmatpush.msra.mxu0 %v882
      %975 = vmatpush.msra.mxu0 %v868
      %976 = vmatpush.msra.mxu0 %v854
      %977 = vmatpush.msra.mxu0 %v841
      %978 = vmatmul.f32.gmra.mxu0 %v940
      %v979 = vpop.f32.mrf.mxu0
      %v980 = vadd.f32 0.0, %v979
      %981 = vdwg.mxu0
      %v982 = vld [vmem:[%s5] sm:$0xff]
      %984 = vset.pattern.permute.xlu0 0
      %985 = vperm.xlu0 %984, %v982
      %v986 = vpop.permute.xlu0 %985
      %v988 = vmul.f32 %v960, %v986
      %v989 = vmul.f32 %v980, %v986
      %990 = vset.pattern.permute.xlu0 1
      %991 = vperm.xlu0 %990, %v982
      %v992 = vpop.permute.xlu0 %991
      %v994 = vadd.f32 %v988, %v992
      %v995 = vadd.f32 %v989, %v992
      %v996 = vmax.f32 %v994, 0.0
      %v997 = vmax.f32 %v995, 0.0
      %998 = vst [vmem:[%s251] sm:$0xff] %v996
      %999 = vst [vmem:[%s251 + $0x8] sm:$0xff] %v997
      %p1000 = scmp.lt.s32.totalorder %s17, 1
      %s1001 = scalar_select %p1000, %s17, 1
      %s1002 = smul.addr %s1001, 2
      %s1003 = smul.addr %s1002, 8
      %s1004 = scalar_lea.vmem %s6, %s1003
      // Predicated region
      $region45: #{up_conv_forward.3} parent=43 // pred_check
        %p1005 = pneg %p166
      $region46: #{up_conv_forward.3} parent=43 // pred_check_branch
        %1007 = sbr.rel (%p1005) target = $region48
      $region47: #{up_conv_forward.3} parent=43 // pred_region
        _
      $region48: #{up_conv_forward.3} parent=43 // pred_fallthru
        _
    $region44: #{up_conv_forward.3} parent=5 // pred_fallthru
      _
    %p1008 = scmp.le.s32.totalorder 2, %s12
    // Predicated region
    $region49: #{up_conv_forward.3} parent=5 // pred_check
      %p1009 = pneg %p1008
    $region50: #{up_conv_forward.3} parent=5 // pred_check_branch
      %1011 = sbr.rel (%p1009) target = $region52
    $region51: #{up_conv_forward.3} parent=5 // pred_region
      %s1012 = ssub.s32 %s12, 2
      // Predicated region
      $region53: #{up_conv_forward.3} parent=51 // pred_check
        %p1013 = pneg %p172
      $region54: #{up_conv_forward.3} parent=51 // pred_check_branch
        %1015 = sbr.rel (%p1013) target = $region56
      $region55: #{up_conv_forward.3} parent=51 // pred_region
        %p1016 = scmp.lt.s32.totalorder %s18, 1
        %s1017 = scalar_select %p1016, %s18, 1
        %s1018 = smul.addr %s1017, 2
        %s1019 = smul.addr %s1018, 8
        %s1020 = scalar_lea.vmem %s6, %s1019
      $region56: #{up_conv_forward.3} parent=51 // pred_fallthru
        _
    $region52: #{up_conv_forward.3} parent=5 // pred_fallthru
      _
  $region6: #{up_conv_forward.3} parent=0 // loop_footer
    %s16 = sadd.s32 1, %s12
  $region7: #{up_conv_forward.3} parent=0 // loop_footer_branch
    %11 = sbr.rel target = $region3
  $region8: #{up_conv_forward.3} parent=0 // loop_exit
    _

// kernel: up_conv_forward.2
$region0: #{up_conv_forward.2}
  #allocation0 [shape = 'u32[]', space=smem, size = 0x4, offset = 0x4, fixed_abs, tag = 'smem constant byte address 0x4 - core index']
  #allocation1 [shape = 'u32[72,128]{1,0:T(1,128)}', space=vmem, size = 0x9000, scoped, tag = 'internal scratch']
  %s0 = inlined_call_operand.vmem [shape: f32[2,64,8], index: 0, kind: input, shape index: {}]
  %s1 = inlined_call_operand.vmem [shape: f32[8,16], index: 1, kind: input, shape index: {}]
  %s2 = inlined_call_operand.vmem [shape: f32[16,8], index: 2, kind: input, shape index: {}]
  %s3 = inlined_call_operand.vmem [shape: f32[9,256], index: 3, kind: input, shape index: {}]
  %s4 = inlined_call_operand.vmem [shape: f32[8,72], index: 4, kind: input, shape index: {}]
  %s5 = inlined_call_operand.vmem [shape: f32[2,8,2], index: 5, kind: output, shape index: {}]
  %s6 = sld [smem:[#allocation0]]
  $region53: #{up_conv_forward.2} parent=0
    _
  %s8 = ssub.s32 1, %s6
  %s9 = scalar_select 0, %s8, %s6
  loop: start=0, step=1, limit=4
  $region2: #{up_conv_forward.2} parent=0 // loop_pre_header
    _
  $region3: #{up_conv_forward.2} parent=0 // loop_header
    %s11 = sphi 0, %s15
    %p12 = scmp.ge.s32.totalorder %s11, 4
    %s21 = sphi 0, %s23
    %s24 = sphi 0, %s21
    %s25 = sphi 0, %s24
    %s41 = sphi 0, %s25
    %s45 = sphi 0, %s45
    %s47 = sphi 0, %s45
    %s48 = sphi 0, %s47
    %s62 = sphi 0, %s48
    %s66 = sphi 0, %s66
    %s68 = sphi 0, %s66
    %s69 = sphi 0, %s68
    %s83 = sphi 0, %s69
    %s87 = sphi 0, %s87
    %s89 = sphi 0, %s87
    %s90 = sphi 0, %s89
    %s104 = sphi 0, %s90
    %s108 = sphi 0, %s108
    %s110 = sphi 0, %s108
    %s111 = sphi 0, %s110
    %s125 = sphi 0, %s111
    %s131 = sphi 0, %s133
    %s134 = sphi 0, %s131
    %s135 = sphi 0, %s134
    %s151 = sphi 0, %s135
  $region4: #{up_conv_forward.2} parent=0 // loop_header_branch
    %14 = sbr.rel (%p12) target = $region8
  $region5: #{up_conv_forward.2} parent=0 // loop_body
    %s16 = ssub.s32 %s11, 1
    %s17 = ssub.s32 %s11, 2
    %s18 = sadd.s32 %s11, 1
    %s19 = ssub.s32 %s11, %s18
    %p20 = scmp.eq.s32.totalorder %s19, 0
    %s22 = sadd.s32 %s21, 1
    %s23 = scalar_select %p20, %s21, %s22
    %p26 = pneg %p20
    %p27 = scmp.eq.s32.totalorder %s11, 1
    %p28 = por %p26, %p27
    %p29 = scmp.ne.s32.totalorder %s21, %s24
    %p30 = scmp.eq.s32.totalorder %s11, 0
    %p31 = por %p29, %p30
    %p32 = scmp.ne.s32.totalorder %s21, %s24
    %p33 = scmp.eq.s32.totalorder %s16, 1
    %p34 = por %p32, %p33
    %p35 = scmp.ne.s32.totalorder %s24, %s25
    %p36 = scmp.eq.s32.totalorder %s16, 0
    %p37 = por %p35, %p36
    %p38 = scmp.ne.s32.totalorder %s24, %s25
    %p39 = scmp.eq.s32.totalorder %s17, 1
    %p40 = por %p38, %p39
    %p42 = scmp.ne.s32.totalorder %s25, %s41
    %p43 = scmp.eq.s32.totalorder %s17, 0
    %p44 = por %p42, %p43
    %s46 = sadd.s32 %s45, 1
    %p49 = scmp.eq.s32.totalorder %s11, 1
    %p50 = scmp.ne.s32.totalorder %s45, %s47
    %p51 = scmp.eq.s32.totalorder %s11, 0
    %p52 = por %p50, %p51
    %p53 = scmp.ne.s32.totalorder %s45, %s47
    %p54 = scmp.eq.s32.totalorder %s16, 1
    %p55 = por %p53, %p54
    %p56 = scmp.ne.s32.totalorder %s47, %s48
    %p57 = scmp.eq.s32.totalorder %s16, 0
    %p58 = por %p56, %p57
    %p59 = scmp.ne.s32.totalorder %s47, %s48
    %p60 = scmp.eq.s32.totalorder %s17, 1
    %p61 = por %p59, %p60
    %p63 = scmp.ne.s32.totalorder %s48, %s62
    %p64 = scmp.eq.s32.totalorder %s17, 0
    %p65 = por %p63, %p64
    %s67 = sadd.s32 %s66, 1
    %p70 = scmp.eq.s32.totalorder %s11, 1
    %p71 = scmp.ne.s32.totalorder %s66, %s68
    %p72 = scmp.eq.s32.totalorder %s11, 0
    %p73 = por %p71, %p72
    %p74 = scmp.ne.s32.totalorder %s66, %s68
    %p75 = scmp.eq.s32.totalorder %s16, 1
    %p76 = por %p74, %p75
    %p77 = scmp.ne.s32.totalorder %s68, %s69
    %p78 = scmp.eq.s32.totalorder %s16, 0
    %p79 = por %p77, %p78
    %p80 = scmp.ne.s32.totalorder %s68, %s69
    %p81 = scmp.eq.s32.totalorder %s17, 1
    %p82 = por %p80, %p81
    %p84 = scmp.ne.s32.totalorder %s69, %s83
    %p85 = scmp.eq.s32.totalorder %s17, 0
    %p86 = por %p84, %p85
    %s88 = sadd.s32 %s87, 1
    %p91 = scmp.eq.s32.totalorder %s11, 1
    %p92 = scmp.ne.s32.totalorder %s87, %s89
    %p93 = scmp.eq.s32.totalorder %s11, 0
    %p94 = por %p92, %p93
    %p95 = scmp.ne.s32.totalorder %s87, %s89
    %p96 = scmp.eq.s32.totalorder %s16, 1
    %p97 = por %p95, %p96
    %p98 = scmp.ne.s32.totalorder %s89, %s90
    %p99 = scmp.eq.s32.totalorder %s16, 0
    %p100 = por %p98, %p99
    %p101 = scmp.ne.s32.totalorder %s89, %s90
    %p102 = scmp.eq.s32.totalorder %s17, 1
    %p103 = por %p101, %p102
    %p105 = scmp.ne.s32.totalorder %s90, %s104
    %p106 = scmp.eq.s32.totalorder %s17, 0
    %p107 = por %p105, %p106
    %s109 = sadd.s32 %s108, 1
    %p112 = scmp.eq.s32.totalorder %s11, 1
    %p113 = scmp.ne.s32.totalorder %s108, %s110
    %p114 = scmp.eq.s32.totalorder %s11, 0
    %p115 = por %p113, %p114
    %p116 = scmp.ne.s32.totalorder %s108, %s110
    %p117 = scmp.eq.s32.totalorder %s16, 1
    %p118 = por %p116, %p117
    %p119 = scmp.ne.s32.totalorder %s110, %s111
    %p120 = scmp.eq.s32.totalorder %s16, 0
    %p121 = por %p119, %p120
    %p122 = scmp.ne.s32.totalorder %s110, %s111
    %p123 = scmp.eq.s32.totalorder %s17, 1
    %p124 = por %p122, %p123
    %p126 = scmp.ne.s32.totalorder %s111, %s125
    %p127 = scmp.eq.s32.totalorder %s17, 0
    %p128 = por %p126, %p127
    %s129 = ssub.s32 %s11, %s18
    %p130 = scmp.eq.s32.totalorder %s129, 0
    %s132 = sadd.s32 %s131, 1
    %s133 = scalar_select %p130, %s131, %s132
    %p136 = pneg %p130
    %p137 = scmp.eq.s32.totalorder %s11, 1
    %p138 = por %p136, %p137
    %p139 = scmp.ne.s32.totalorder %s131, %s134
    %p140 = scmp.eq.s32.totalorder %s11, 0
    %p141 = por %p139, %p140
    %p142 = scmp.ne.s32.totalorder %s131, %s134
    %p143 = scmp.eq.s32.totalorder %s16, 1
    %p144 = por %p142, %p143
    %p145 = scmp.ne.s32.totalorder %s134, %s135
    %p146 = scmp.eq.s32.totalorder %s16, 0
    %p147 = por %p145, %p146
    %p148 = scmp.ne.s32.totalorder %s134, %s135
    %p149 = scmp.eq.s32.totalorder %s17, 1
    %p150 = por %p148, %p149
    %p152 = scmp.ne.s32.totalorder %s135, %s151
    %p153 = scmp.eq.s32.totalorder %s17, 0
    %p154 = por %p152, %p153
    %p155 = scmp.le.s32.totalorder 1, %s11
    %p156 = scmp.lt.s32.totalorder %s11, 3
    %p157 = pnand %p155, %p156
    %p158 = pneg %p157
    // Predicated region
    $region9: #{up_conv_forward.2} parent=5 // pred_check
      _
    $region10: #{up_conv_forward.2} parent=5 // pred_check_branch
      %160 = sbr.rel (%p157) target = $region12
    $region11: #{up_conv_forward.2} parent=5 // pred_region
      %s161 = ssub.s32 %s11, 1
      // Predicated region
      $region13: #{up_conv_forward.2} parent=11 // pred_check
        %p162 = pneg %p58
      $region14: #{up_conv_forward.2} parent=11 // pred_check_branch
        %164 = sbr.rel (%p162) target = $region16
      $region15: #{up_conv_forward.2} parent=11 // pred_region
        _
      $region16: #{up_conv_forward.2} parent=11 // pred_fallthru
        _
      // Predicated region
      $region17: #{up_conv_forward.2} parent=11 // pred_check
        %p165 = pneg %p79
      $region18: #{up_conv_forward.2} parent=11 // pred_check_branch
        %167 = sbr.rel (%p165) target = $region20
      $region19: #{up_conv_forward.2} parent=11 // pred_region
        _
      $region20: #{up_conv_forward.2} parent=11 // pred_fallthru
        _
      // Predicated region
      $region21: #{up_conv_forward.2} parent=11 // pred_check
        %p168 = pneg %p100
      $region22: #{up_conv_forward.2} parent=11 // pred_check_branch
        %170 = sbr.rel (%p168) target = $region24
      $region23: #{up_conv_forward.2} parent=11 // pred_region
        _
      $region24: #{up_conv_forward.2} parent=11 // pred_fallthru
        _
      // Predicated region
      $region25: #{up_conv_forward.2} parent=11 // pred_check
        %p171 = pneg %p121
      $region26: #{up_conv_forward.2} parent=11 // pred_check_branch
        %173 = sbr.rel (%p171) target = $region28
      $region27: #{up_conv_forward.2} parent=11 // pred_region
        _
      $region28: #{up_conv_forward.2} parent=11 // pred_fallthru
        _
    $region12: #{up_conv_forward.2} parent=5 // pred_fallthru
      _
    %p174 = scmp.lt.s32.totalorder %s11, 2
    // Predicated region
    $region29: #{up_conv_forward.2} parent=5 // pred_check
      %p175 = pneg %p174
    $region30: #{up_conv_forward.2} parent=5 // pred_check_branch
      %177 = sbr.rel (%p175) target = $region32
    $region31: #{up_conv_forward.2} parent=5 // pred_region
      // Predicated region
      $region33: #{up_conv_forward.2} parent=31 // pred_check
        %p178 = pneg %p31
      $region34: #{up_conv_forward.2} parent=31 // pred_check_branch
        %180 = sbr.rel (%p178) target = $region36
      $region35: #{up_conv_forward.2} parent=31 // pred_region
        %p181 = scmp.lt.s32.totalorder %s11, 1
        %s182 = scalar_select %p181, %s11, 1
        %s183 = smul.addr %s182, 8
        %s184 = smul.addr %s183, 8
        %s185 = scalar_lea.vmem %s0, %s184
      $region36: #{up_conv_forward.2} parent=31 // pred_fallthru
        _
    $region32: #{up_conv_forward.2} parent=5 // pred_fallthru
      _
    %p186 = scmp.le.s32.totalorder 1, %s11
    %p187 = scmp.lt.s32.totalorder %s11, 3
    %p188 = pnand %p186, %p187
    %p189 = pneg %p188
    // Predicated region
    $region37: #{up_conv_forward.2} parent=5 // pred_check
      _
    $region38: #{up_conv_forward.2} parent=5 // pred_check_branch
      %191 = sbr.rel (%p188) target = $region40
    $region39: #{up_conv_forward.2} parent=5 // pred_region
      %s192 = ssub.s32 %s11, 1
      %p193 = scmp.lt.s32.totalorder %s16, 1
      %s194 = scalar_select %p193, %s16, 1
      %s195 = smul.addr %s194, 8
      %s196 = smul.addr %s195, 8
      %s197 = scalar_lea.vmem %s0, %s196
      %p198 = pneg %p37
      %p199 = pneg %p34
      %p200 = pneg %p58
      %p201 = pneg %p55
      %p202 = pneg %p79
      %p203 = pneg %p76
      %p204 = pneg %p100
      %p205 = pneg %p97
      %p206 = pneg %p121
      %p207 = pneg %p118
      %p208 = pneg %p147
      %p209 = pneg %p144
      %p210 = scmp.lt.s32.totalorder %s16, 1
      %s211 = scalar_select %p210, %s16, 1
      %s212 = smul.addr %s211, 8
      %s213 = scalar_lea.vmem %s5, %s212
      %p214 = scmp.lt.s32.totalorder %s16, 1
      %s215 = scalar_select %p214, %s16, 1
      %s216 = smul.addr %s215, 8
      %s217 = smul.addr %s216, 8
      %s218 = scalar_lea.vmem %s0, %s217
      %p219 = scmp.lt.s32.totalorder %s16, 1
      %s220 = scalar_select %p219, %s16, 1
      %s221 = smul.addr %s220, 8
      %s222 = scalar_lea.vmem %s5, %s221
      %v223 = vld [vmem:[%s218] sm:$0xff]
      %v224 = vld [vmem:[%s218 + $0x8] sm:$0xff]
      %v225 = vld [vmem:[%s218 + $0x10] sm:$0xff]
      %v226 = vld [vmem:[%s218 + $0x18] sm:$0xff]
      %v227 = vld [vmem:[%s218 + $0x20] sm:$0xff]
      %v228 = vld [vmem:[%s218 + $0x28] sm:$0xff]
      %v229 = vld [vmem:[%s218 + $0x30] sm:$0xff]
      %v230 = vld [vmem:[%s218 + $0x38] sm:$0xff]
      %v231 = vld [vmem:[%s1] sm:$0xff]
      %v232 = vld [vmem:[%s2] sm:$0xff]
      %v233 = vld [vmem:[%s2 + $0x8] sm:$0xff]
      %v234 = vld [vmem:[%s3] sm:$0xff]
      %v235 = vld [vmem:[%s3 + $0x8] sm:$0xff]
      %v236 = vld [vmem:[%s3 + $0x10] sm:$0x1]
      %v237 = vld [vmem:[%s3 + $0x18] sm:$0x1]
      %v238 = vld [vmem:[%s4] sm:$0xff]
      %vm239 = vcmask 64512
      %v241 = vsel %vm239, %v223, 0
      %v244 = vsel %vm239, %v224, 0
      %v247 = vsel %vm239, %v225, 0
      %v250 = vsel %vm239, %v226, 0
      %v253 = vsel %vm239, %v227, 0
      %v256 = vsel %vm239, %v228, 0
      %v259 = vsel %vm239, %v229, 0
      %v262 = vsel %vm239, %v230, 0
      %264 = vmatpush.msra.mxu0 0.0
      %265 = vmatpush.msra.mxu0 0.0
      %266 = vmatpush.msra.mxu0 0.0
      %267 = vmatpush.msra.mxu0 0.0
      %268 = vmatpush.msra.mxu0 0.0
      %269 = vmatpush.msra.mxu0 0.0
      %270 = vmatpush.msra.mxu0 0.0
      %271 = vmatpush.msra.mxu0 0.0
      %272 = vmatpush.msra.mxu0 0.0
      %273 = vmatpush.msra.mxu0 0.0
      %274 = vmatpush.msra.mxu0 0.0
      %275 = vmatpush.msra.mxu0 0.0
      %276 = vmatpush.msra.mxu0 0.0
      %277 = vmatpush.msra.mxu0 0.0
      %278 = vmatpush.msra.mxu0 0.0
      %279 = vmatpush.msra.mxu0 %v231
      %280 = vmatmul.f32.gmra.mxu0 %v241
      %v281 = vpop.f32.mrf.mxu0
      %v282 = vadd.f32 0.0, %v281
      %283 = vmatmul.f32.gmra.mxu0 %v244
      %v284 = vpop.f32.mrf.mxu0
      %v285 = vadd.f32 0.0, %v284
      %286 = vmatmul.f32.gmra.mxu0 %v247
      %v287 = vpop.f32.mrf.mxu0
      %v288 = vadd.f32 0.0, %v287
      %289 = vmatmul.f32.gmra.mxu0 %v250
      %v290 = vpop.f32.mrf.mxu0
      %v291 = vadd.f32 0.0, %v290
      %292 = vmatmul.f32.gmra.mxu0 %v253
      %v293 = vpop.f32.mrf.mxu0
      %v294 = vadd.f32 0.0, %v293
      %295 = vmatmul.f32.gmra.mxu0 %v256
      %v296 = vpop.f32.mrf.mxu0
      %v297 = vadd.f32 0.0, %v296
      %298 = vmatmul.f32.gmra.mxu0 %v259
      %v299 = vpop.f32.mrf.mxu0
      %v300 = vadd.f32 0.0, %v299
      %301 = vmatmul.f32.gmra.mxu0 %v262
      %v302 = vpop.f32.mrf.mxu0
      %v303 = vadd.f32 0.0, %v302
      %304 = vdwg.mxu0
      %v306 = vsel %vm239, %v232, 0
      %v309 = vsel %vm239, %v233, 0
      %311 = vmatpush.msra.mxu0 0.0
      %312 = vmatpush.msra.mxu0 0.0
      %313 = vmatpush.msra.mxu0 0.0
      %314 = vmatpush.msra.mxu0 0.0
      %315 = vmatpush.msra.mxu0 0.0
      %316 = vmatpush.msra.mxu0 0.0
      %317 = vmatpush.msra.mxu0 0.0
      %318 = vmatpush.msra.mxu0 0.0
      %319 = vmatpush.msra.mxu0 0.0
      %320 = vmatpush.msra.mxu0 0.0
      %321 = vmatpush.msra.mxu0 0.0
      %322 = vmatpush.msra.mxu0 0.0
      %323 = vmatpush.msra.mxu0 0.0
      %324 = vmatpush.msra.mxu0 0.0
      %325 = vmatpush.msra.mxu0 0.0
      %326 = vmatpush.msra.mxu0 %v282
      %327 = vmatmul.f32.gmra.mxu0 %v306
      %v328 = vpop.f32.mrf.mxu0
      %v329 = vadd.f32 0.0, %v328
      %330 = vmatmul.f32.gmra.mxu0 %v309
      %v331 = vpop.f32.mrf.mxu0
      %v332 = vadd.f32 0.0, %v331
      %333 = vdwg.mxu0
      %334 = vmatpush.msra.mxu0 0.0
      %335 = vmatpush.msra.mxu0 0.0
      %336 = vmatpush.msra.mxu0 0.0
      %337 = vmatpush.msra.mxu0 0.0
      %338 = vmatpush.msra.mxu0 0.0
      %339 = vmatpush.msra.mxu0 0.0
      %340 = vmatpush.msra.mxu0 0.0
      %341 = vmatpush.msra.mxu0 0.0
      %342 = vmatpush.msra.mxu0 0.0
      %343 = vmatpush.msra.mxu0 0.0
      %344 = vmatpush.msra.mxu0 0.0
      %345 = vmatpush.msra.mxu0 0.0
      %346 = vmatpush.msra.mxu0 0.0
      %347 = vmatpush.msra.mxu0 0.0
      %348 = vmatpush.msra.mxu0 0.0
      %349 = vmatpush.msra.mxu0 %v285
      %350 = vmatmul.f32.gmra.mxu0 %v306
      %v351 = vpop.f32.mrf.mxu0
      %v352 = vadd.f32 0.0, %v351
      %353 = vmatmul.f32.gmra.mxu0 %v309
      %v354 = vpop.f32.mrf.mxu0
      %v355 = vadd.f32 0.0, %v354
      %356 = vdwg.mxu0
      %357 = vmatpush.msra.mxu0 0.0
      %358 = vmatpush.msra.mxu0 0.0
      %359 = vmatpush.msra.mxu0 0.0
      %360 = vmatpush.msra.mxu0 0.0
      %361 = vmatpush.msra.mxu0 0.0
      %362 = vmatpush.msra.mxu0 0.0
      %363 = vmatpush.msra.mxu0 0.0
      %364 = vmatpush.msra.mxu0 0.0
      %365 = vmatpush.msra.mxu0 0.0
      %366 = vmatpush.msra.mxu0 0.0
      %367 = vmatpush.msra.mxu0 0.0
      %368 = vmatpush.msra.mxu0 0.0
      %369 = vmatpush.msra.mxu0 0.0
      %370 = vmatpush.msra.mxu0 0.0
      %371 = vmatpush.msra.mxu0 0.0
      %372 = vmatpush.msra.mxu0 %v288
      %373 = vmatmul.f32.gmra.mxu0 %v306
      %v374 = vpop.f32.mrf.mxu0
      %v375 = vadd.f32 0.0, %v374
      %376 = vmatmul.f32.gmra.mxu0 %v309
      %v377 = vpop.f32.mrf.mxu0
      %v378 = vadd.f32 0.0, %v377
      %379 = vdwg.mxu0
      %380 = vmatpush.msra.mxu0 0.0
      %381 = vmatpush.msra.mxu0 0.0
      %382 = vmatpush.msra.mxu0 0.0
      %383 = vmatpush.msra.mxu0 0.0
      %384 = vmatpush.msra.mxu0 0.0
      %385 = vmatpush.msra.mxu0 0.0
      %386 = vmatpush.msra.mxu0 0.0
      %387 = vmatpush.msra.mxu0 0.0
      %388 = vmatpush.msra.mxu0 0.0
      %389 = vmatpush.msra.mxu0 0.0
      %390 = vmatpush.msra.mxu0 0.0
      %391 = vmatpush.msra.mxu0 0.0
      %392 = vmatpush.msra.mxu0 0.0
      %393 = vmatpush.msra.mxu0 0.0
      %394 = vmatpush.msra.mxu0 0.0
      %395 = vmatpush.msra.mxu0 %v291
      %396 = vmatmul.f32.gmra.mxu0 %v306
      %v397 = vpop.f32.mrf.mxu0
      %v398 = vadd.f32 0.0, %v397
      %399 = vmatmul.f32.gmra.mxu0 %v309
      %v400 = vpop.f32.mrf.mxu0
      %v401 = vadd.f32 0.0, %v400
      %402 = vdwg.mxu0
      %403 = vmatpush.msra.mxu0 0.0
      %404 = vmatpush.msra.mxu0 0.0
      %405 = vmatpush.msra.mxu0 0.0
      %406 = vmatpush.msra.mxu0 0.0
      %407 = vmatpush.msra.mxu0 0.0
      %408 = vmatpush.msra.mxu0 0.0
      %409 = vmatpush.msra.mxu0 0.0
      %410 = vmatpush.msra.mxu0 0.0
      %411 = vmatpush.msra.mxu0 0.0
      %412 = vmatpush.msra.mxu0 0.0
      %413 = vmatpush.msra.mxu0 0.0
      %414 = vmatpush.msra.mxu0 0.0
      %415 = vmatpush.msra.mxu0 0.0
      %416 = vmatpush.msra.mxu0 0.0
      %417 = vmatpush.msra.mxu0 0.0
      %418 = vmatpush.msra.mxu0 %v294
      %419 = vmatmul.f32.gmra.mxu0 %v306
      %v420 = vpop.f32.mrf.mxu0
      %v421 = vadd.f32 0.0, %v420
      %422 = vmatmul.f32.gmra.mxu0 %v309
      %v423 = vpop.f32.mrf.mxu0
      %v424 = vadd.f32 0.0, %v423
      %425 = vdwg.mxu0
      %426 = vmatpush.msra.mxu0 0.0
      %427 = vmatpush.msra.mxu0 0.0
      %428 = vmatpush.msra.mxu0 0.0
      %429 = vmatpush.msra.mxu0 0.0
      %430 = vmatpush.msra.mxu0 0.0
      %431 = vmatpush.msra.mxu0 0.0
      %432 = vmatpush.msra.mxu0 0.0
      %433 = vmatpush.msra.mxu0 0.0
      %434 = vmatpush.msra.mxu0 0.0
      %435 = vmatpush.msra.mxu0 0.0
      %436 = vmatpush.msra.mxu0 0.0
      %437 = vmatpush.msra.mxu0 0.0
      %438 = vmatpush.msra.mxu0 0.0
      %439 = vmatpush.msra.mxu0 0.0
      %440 = vmatpush.msra.mxu0 0.0
      %441 = vmatpush.msra.mxu0 %v297
      %442 = vmatmul.f32.gmra.mxu0 %v306
      %v443 = vpop.f32.mrf.mxu0
      %v444 = vadd.f32 0.0, %v443
      %445 = vmatmul.f32.gmra.mxu0 %v309
      %v446 = vpop.f32.mrf.mxu0
      %v447 = vadd.f32 0.0, %v446
      %448 = vdwg.mxu0
      %449 = vmatpush.msra.mxu0 0.0
      %450 = vmatpush.msra.mxu0 0.0
      %451 = vmatpush.msra.mxu0 0.0
      %452 = vmatpush.msra.mxu0 0.0
      %453 = vmatpush.msra.mxu0 0.0
      %454 = vmatpush.msra.mxu0 0.0
      %455 = vmatpush.msra.mxu0 0.0
      %456 = vmatpush.msra.mxu0 0.0
      %457 = vmatpush.msra.mxu0 0.0
      %458 = vmatpush.msra.mxu0 0.0
      %459 = vmatpush.msra.mxu0 0.0
      %460 = vmatpush.msra.mxu0 0.0
      %461 = vmatpush.msra.mxu0 0.0
      %462 = vmatpush.msra.mxu0 0.0
      %463 = vmatpush.msra.mxu0 0.0
      %464 = vmatpush.msra.mxu0 %v300
      %465 = vmatmul.f32.gmra.mxu0 %v306
      %v466 = vpop.f32.mrf.mxu0
      %v467 = vadd.f32 0.0, %v466
      %468 = vmatmul.f32.gmra.mxu0 %v309
      %v469 = vpop.f32.mrf.mxu0
      %v470 = vadd.f32 0.0, %v469
      %471 = vdwg.mxu0
      %472 = vmatpush.msra.mxu0 0.0
      %473 = vmatpush.msra.mxu0 0.0
      %474 = vmatpush.msra.mxu0 0.0
      %475 = vmatpush.msra.mxu0 0.0
      %476 = vmatpush.msra.mxu0 0.0
      %477 = vmatpush.msra.mxu0 0.0
      %478 = vmatpush.msra.mxu0 0.0
      %479 = vmatpush.msra.mxu0 0.0
      %480 = vmatpush.msra.mxu0 0.0
      %481 = vmatpush.msra.mxu0 0.0
      %482 = vmatpush.msra.mxu0 0.0
      %483 = vmatpush.msra.mxu0 0.0
      %484 = vmatpush.msra.mxu0 0.0
      %485 = vmatpush.msra.mxu0 0.0
      %486 = vmatpush.msra.mxu0 0.0
      %487 = vmatpush.msra.mxu0 %v303
      %488 = vmatmul.f32.gmra.mxu0 %v306
      %v489 = vpop.f32.mrf.mxu0
      %v490 = vadd.f32 0.0, %v489
      %491 = vmatmul.f32.gmra.mxu0 %v309
      %v492 = vpop.f32.mrf.mxu0
      %v493 = vadd.f32 0.0, %v492
      %494 = vdwg.mxu0
      %v495 = vrot.slane %v375, 4
      %vm496 = vcmask 1047556
      %v497 = vsel %vm496, %v495, %v329
      %v498 = vrot.slane %v329, 4
      %v499 = vsel %vm496, %v375, %v498
      %v501 = vunpack.c.l.s4 1983009808
      %v502 = vunpack.c.0.s8 %v501
      %v503 = vperm.slane %v497, %v502
      %v505 = vunpack.c.l.s4 1983009808
      %v506 = vunpack.c.0.s8 %v505
      %v507 = vperm.slane %v499, %v506
      %v508 = vrot.slane %v398, 4
      %v509 = vsel %vm496, %v508, %v352
      %v510 = vrot.slane %v352, 4
      %v511 = vsel %vm496, %v398, %v510
      %v513 = vunpack.c.l.s4 1983009808
      %v514 = vunpack.c.0.s8 %v513
      %v515 = vperm.slane %v509, %v514
      %v517 = vunpack.c.l.s4 1983009808
      %v518 = vunpack.c.0.s8 %v517
      %v519 = vperm.slane %v511, %v518
      %v520 = vrot.slane %v467, 4
      %v521 = vsel %vm496, %v520, %v421
      %v522 = vrot.slane %v421, 4
      %v523 = vsel %vm496, %v467, %v522
      %v525 = vunpack.c.l.s4 1983009808
      %v526 = vunpack.c.0.s8 %v525
      %v527 = vperm.slane %v521, %v526
      %v529 = vunpack.c.l.s4 1983009808
      %v530 = vunpack.c.0.s8 %v529
      %v531 = vperm.slane %v523, %v530
      %v532 = vrot.slane %v490, 4
      %v533 = vsel %vm496, %v532, %v444
      %v534 = vrot.slane %v444, 4
      %v535 = vsel %vm496, %v490, %v534
      %v537 = vunpack.c.l.s4 1983009808
      %v538 = vunpack.c.0.s8 %v537
      %v539 = vperm.slane %v533, %v538
      %v541 = vunpack.c.l.s4 1983009808
      %v542 = vunpack.c.0.s8 %v541
      %v543 = vperm.slane %v535, %v542
      %v544 = vrot.slane %v515, 4
      %v545 = vsel %vm496, %v544, %v503
      %v546 = vrot.slane %v503, 4
      %v547 = vsel %vm496, %v515, %v546
      %v549 = vunpack.c.l.s4 1934713408
      %v550 = vunpack.c.0.s8 %v549
      %v551 = vperm.slane %v545, %v550
      %v553 = vunpack.c.l.s4 1934713408
      %v554 = vunpack.c.0.s8 %v553
      %v555 = vperm.slane %v547, %v554
      %v556 = vrot.slane %v519, 4
      %v557 = vsel %vm496, %v556, %v507
      %v558 = vrot.slane %v507, 4
      %v559 = vsel %vm496, %v519, %v558
      %v561 = vunpack.c.l.s4 1934713408
      %v562 = vunpack.c.0.s8 %v561
      %v563 = vperm.slane %v557, %v562
      %v565 = vunpack.c.l.s4 1934713408
      %v566 = vunpack.c.0.s8 %v565
      %v567 = vperm.slane %v559, %v566
      %v568 = vrot.slane %v539, 4
      %v569 = vsel %vm496, %v568, %v527
      %v570 = vrot.slane %v527, 4
      %v571 = vsel %vm496, %v539, %v570
      %v573 = vunpack.c.l.s4 1934713408
      %v574 = vunpack.c.0.s8 %v573
      %v575 = vperm.slane %v569, %v574
      %v577 = vunpack.c.l.s4 1934713408
      %v578 = vunpack.c.0.s8 %v577
      %v579 = vperm.slane %v571, %v578
      %v580 = vrot.slane %v543, 4
      %v581 = vsel %vm496, %v580, %v531
      %v582 = vrot.slane %v531, 4
      %v583 = vsel %vm496, %v543, %v582
      %v585 = vunpack.c.l.s4 1934713408
      %v586 = vunpack.c.0.s8 %v585
      %v587 = vperm.slane %v581, %v586
      %v589 = vunpack.c.l.s4 1934713408
      %v590 = vunpack.c.0.s8 %v589
      %v591 = vperm.slane %v583, %v590
      %v592 = vrot.slane %v575, 4
      %v593 = vsel %vm496, %v592, %v551
      %v594 = vrot.slane %v551, 4
      %v595 = vsel %vm496, %v575, %v594
      %v596 = vrot.slane %v579, 4
      %v597 = vsel %vm496, %v596, %v555
      %v598 = vrot.slane %v555, 4
      %v599 = vsel %vm496, %v579, %v598
      %v600 = vrot.slane %v587, 4
      %v601 = vsel %vm496, %v600, %v563
      %v602 = vrot.slane %v563, 4
      %v603 = vsel %vm496, %v587, %v602
      %v604 = vrot.slane %v591, 4
      %v605 = vsel %vm496, %v604, %v567
      %v606 = vrot.slane %v567, 4
      %v607 = vsel %vm496, %v591, %v606
      %v608 = vrot.slane %v378, 4
      %v609 = vsel %vm496, %v608, %v332
      %v610 = vrot.slane %v332, 4
      %v611 = vsel %vm496, %v378, %v610
      %v613 = vunpack.c.l.s4 1983009808
      %v614 = vunpack.c.0.s8 %v613
      %v615 = vperm.slane %v609, %v614
      %v617 = vunpack.c.l.s4 1983009808
      %v618 = vunpack.c.0.s8 %v617
      %v619 = vperm.slane %v611, %v618
      %v620 = vrot.slane %v401, 4
      %v621 = vsel %vm496, %v620, %v355
      %v622 = vrot.slane %v355, 4
      %v623 = vsel %vm496, %v401, %v622
      %v625 = vunpack.c.l.s4 1983009808
      %v626 = vunpack.c.0.s8 %v625
      %v627 = vperm.slane %v621, %v626
      %v629 = vunpack.c.l.s4 1983009808
      %v630 = vunpack.c.0.s8 %v629
      %v631 = vperm.slane %v623, %v630
      %v632 = vrot.slane %v470, 4
      %v633 = vsel %vm496, %v632, %v424
      %v634 = vrot.slane %v424, 4
      %v635 = vsel %vm496, %v470, %v634
      %v637 = vunpack.c.l.s4 1983009808
      %v638 = vunpack.c.0.s8 %v637
      %v639 = vperm.slane %v633, %v638
      %v641 = vunpack.c.l.s4 1983009808
      %v642 = vunpack.c.0.s8 %v641
      %v643 = vperm.slane %v635, %v642
      %v644 = vrot.slane %v493, 4
      %v645 = vsel %vm496, %v644, %v447
      %v646 = vrot.slane %v447, 4
      %v647 = vsel %vm496, %v493, %v646
      %v649 = vunpack.c.l.s4 1983009808
      %v650 = vunpack.c.0.s8 %v649
      %v651 = vperm.slane %v645, %v650
      %v653 = vunpack.c.l.s4 1983009808
      %v654 = vunpack.c.0.s8 %v653
      %v655 = vperm.slane %v647, %v654
      %v656 = vrot.slane %v627, 4
      %v657 = vsel %vm496, %v656, %v615
      %v658 = vrot.slane %v615, 4
      %v659 = vsel %vm496, %v627, %v658
      %v661 = vunpack.c.l.s4 1934713408
      %v662 = vunpack.c.0.s8 %v661
      %v663 = vperm.slane %v657, %v662
      %v665 = vunpack.c.l.s4 1934713408
      %v666 = vunpack.c.0.s8 %v665
      %v667 = vperm.slane %v659, %v666
      %v668 = vrot.slane %v631, 4
      %v669 = vsel %vm496, %v668, %v619
      %v670 = vrot.slane %v619, 4
      %v671 = vsel %vm496, %v631, %v670
      %v673 = vunpack.c.l.s4 1934713408
      %v674 = vunpack.c.0.s8 %v673
      %v675 = vperm.slane %v669, %v674
      %v677 = vunpack.c.l.s4 1934713408
      %v678 = vunpack.c.0.s8 %v677
      %v679 = vperm.slane %v671, %v678
      %v680 = vrot.slane %v651, 4
      %v681 = vsel %vm496, %v680, %v639
      %v682 = vrot.slane %v639, 4
      %v683 = vsel %vm496, %v651, %v682
      %v685 = vunpack.c.l.s4 1934713408
      %v686 = vunpack.c.0.s8 %v685
      %v687 = vperm.slane %v681, %v686
      %v689 = vunpack.c.l.s4 1934713408
      %v690 = vunpack.c.0.s8 %v689
      %v691 = vperm.slane %v683, %v690
      %v692 = vrot.slane %v655, 4
      %v693 = vsel %vm496, %v692, %v643
      %v694 = vrot.slane %v643, 4
      %v695 = vsel %vm496, %v655, %v694
      %v697 = vunpack.c.l.s4 1934713408
      %v698 = vunpack.c.0.s8 %v697
      %v699 = vperm.slane %v693, %v698
      %v701 = vunpack.c.l.s4 1934713408
      %v702 = vunpack.c.0.s8 %v701
      %v703 = vperm.slane %v695, %v702
      %v704 = vrot.slane %v687, 4
      %v705 = vsel %vm496, %v704, %v663
      %v706 = vrot.slane %v663, 4
      %v707 = vsel %vm496, %v687, %v706
      %v708 = vrot.slane %v691, 4
      %v709 = vsel %vm496, %v708, %v667
      %v710 = vrot.slane %v667, 4
      %v711 = vsel %vm496, %v691, %v710
      %v712 = vrot.slane %v699, 4
      %v713 = vsel %vm496, %v712, %v675
      %v714 = vrot.slane %v675, 4
      %v715 = vsel %vm496, %v699, %v714
      %v716 = vrot.slane %v703, 4
      %v717 = vsel %vm496, %v716, %v679
      %v718 = vrot.slane %v679, 4
      %v719 = vsel %vm496, %v703, %v718
      %721 = vrot.lane.b32.xlu0 %v595, 16
      %v722 = vpop.permute.xlu0 %721
      %725 = vrot.lane.b32.xlu0 %v597, 32
      %v726 = vpop.permute.xlu0 %725
      %729 = vrot.lane.b32.xlu0 %v599, 48
      %v730 = vpop.permute.xlu0 %729
      %733 = vrot.lane.b32.xlu0 %v601, 64
      %v734 = vpop.permute.xlu0 %733
      %737 = vrot.lane.b32.xlu0 %v603, 80
      %v738 = vpop.permute.xlu0 %737
      %741 = vrot.lane.b32.xlu0 %v605, 96
      %v742 = vpop.permute.xlu0 %741
      %745 = vrot.lane.b32.xlu0 %v607, 112
      %v746 = vpop.permute.xlu0 %745
      %749 = vrot.lane.b32.xlu0 %v707, 16
      %v750 = vpop.permute.xlu0 %749
      %753 = vrot.lane.b32.xlu0 %v709, 32
      %v754 = vpop.permute.xlu0 %753
      %757 = vrot.lane.b32.xlu0 %v711, 48
      %v758 = vpop.permute.xlu0 %757
      %761 = vrot.lane.b32.xlu0 %v713, 64
      %v762 = vpop.permute.xlu0 %761
      %765 = vrot.lane.b32.xlu0 %v715, 80
      %v766 = vpop.permute.xlu0 %765
      %769 = vrot.lane.b32.xlu0 %v717, 96
      %v770 = vpop.permute.xlu0 %769
      %773 = vrot.lane.b32.xlu0 %v719, 112
      %v774 = vpop.permute.xlu0 %773
      %vm776 = vcmask 130048
      %v777 = vsel %vm776, %v593, %v722
      %vm778 = vcmask 261120
      %v779 = vsel %vm778, %v777, %v726
      %vm780 = vcmask 392192
      %v781 = vsel %vm780, %v779, %v730
      %vm782 = vcmask 523264
      %v783 = vsel %vm782, %v781, %v734
      %vm784 = vcmask 654336
      %v785 = vsel %vm784, %v783, %v738
      %vm786 = vcmask 785408
      %v787 = vsel %vm786, %v785, %v742
      %vm788 = vcmask 916480
      %v789 = vsel %vm788, %v787, %v746
      %v790 = vsel %vm776, %v705, %v750
      %v791 = vsel %vm778, %v790, %v754
      %v792 = vsel %vm780, %v791, %v758
      %v793 = vsel %vm782, %v792, %v762
      %v794 = vsel %vm784, %v793, %v766
      %v795 = vsel %vm786, %v794, %v770
      %v796 = vsel %vm788, %v795, %v774
      %798 = vrot.lane.b32.xlu0 %v796, 17
      %v799 = vpop.permute.xlu0 %798
      %802 = vrot.lane.b32.xlu0 %v789, 17
      %v803 = vpop.permute.xlu0 %802
      %vm804 = vcmask 138240
      %v805 = vsel %vm804, %v803, %v799
      %v808 = vsel %vm804, %v799, %v803
      %v809 = vperm.slane %v234, 0
      %v810 = vperm.slane %v235, 0
      %v811 = vmul.f32 %v808, %v809
      %v812 = vmul.f32 %v805, %v810
      %813 = vrot.lane.b32.xlu0 %v796, 16
      %v814 = vpop.permute.xlu0 %813
      %816 = vrot.lane.b32.xlu0 %v789, 16
      %v817 = vpop.permute.xlu0 %816
      %v818 = vsel %vm776, %v817, %v814
      %v821 = vsel %vm776, %v814, %v817
      %v822 = vperm.slane %v234, 1
      %v823 = vperm.slane %v235, 1
      %v824 = vmul.f32 %v821, %v822
      %v825 = vmul.f32 %v818, %v823
      %826 = vrot.lane.b32.xlu0 %v796, 15
      %v827 = vpop.permute.xlu0 %826
      %829 = vrot.lane.b32.xlu0 %v789, 15
      %v830 = vpop.permute.xlu0 %829
      %vm831 = vcmask 121856
      %v832 = vsel %vm831, %v830, %v827
      %v835 = vsel %vm831, %v827, %v830
      %v836 = vperm.slane %v234, 2
      %v837 = vperm.slane %v235, 2
      %v838 = vmul.f32 %v835, %v836
      %v839 = vmul.f32 %v832, %v837
      %840 = vrot.lane.b32.xlu0 %v796, 1
      %v841 = vpop.permute.xlu0 %840
      %843 = vrot.lane.b32.xlu0 %v789, 1
      %v844 = vpop.permute.xlu0 %843
      %vm845 = vcmask 7168
      %v846 = vsel %vm845, %v844, %v841
      %v849 = vsel %vm845, %v841, %v844
      %v850 = vperm.slane %v234, 3
      %v851 = vperm.slane %v235, 3
      %v852 = vmul.f32 %v849, %v850
      %v853 = vmul.f32 %v846, %v851
      %854 = vrot.lane.b32.xlu0 %v789, 127
      %v855 = vpop.permute.xlu0 %854
      %856 = vrot.lane.b32.xlu0 %v796, 127
      %v857 = vpop.permute.xlu0 %856
      %vm858 = vcmask 1039360
      %v859 = vsel %vm858, %v855, %v857
      %v863 = vsel %vm858, %v857, %v855
      %v864 = vperm.slane %v234, 5
      %v865 = vperm.slane %v235, 5
      %v866 = vmul.f32 %v859, %v864
      %v867 = vmul.f32 %v863, %v865
      %868 = vrot.lane.b32.xlu0 %v789, 113
      %v869 = vpop.permute.xlu0 %868
      %870 = vrot.lane.b32.xlu0 %v796, 113
      %v871 = vpop.permute.xlu0 %870
      %vm872 = vcmask 924672
      %v873 = vsel %vm872, %v869, %v871
      %v877 = vsel %vm872, %v871, %v869
      %v878 = vperm.slane %v234, 6
      %v879 = vperm.slane %v235, 6
      %v880 = vmul.f32 %v873, %v878
      %v881 = vmul.f32 %v877, %v879
      %882 = vrot.lane.b32.xlu0 %v789, 112
      %v883 = vpop.permute.xlu0 %882
      %884 = vrot.lane.b32.xlu0 %v796, 112
      %v885 = vpop.permute.xlu0 %884
      %v886 = vsel %vm788, %v883, %v885
      %v890 = vsel %vm788, %v885, %v883
      %v891 = vperm.slane %v234, 7
      %v892 = vperm.slane %v235, 7
      %v893 = vmul.f32 %v886, %v891
      %v894 = vmul.f32 %v890, %v892
      %895 = vrot.lane.b32.xlu0 %v789, 111
      %v896 = vpop.permute.xlu0 %895
      %897 = vrot.lane.b32.xlu0 %v796, 111
      %v898 = vpop.permute.xlu0 %897
      %vm899 = vcmask 908288
      %v900 = vsel %vm899, %v896, %v898
      %v904 = vsel %vm899, %v898, %v896
      %v905 = vperm.slane %v236, 0
      %v906 = vperm.slane %v237, 0
      %v907 = vmul.f32 %v900, %v905
      %v908 = vmul.f32 %v904, %v906
      %vm909 = vcmask 588800
      %v911 = vsel %vm909, %v238, 0
      %913 = vmatpush.msra.mxu0 0.0
      %914 = vmatpush.msra.mxu0 0.0
      %915 = vmatpush.msra.mxu0 0.0
      %916 = vmatpush.msra.mxu0 0.0
      %917 = vmatpush.msra.mxu0 0.0
      %918 = vmatpush.msra.mxu0 0.0
      %919 = vmatpush.msra.mxu0 0.0
      %920 = vmatpush.msra.mxu0 %v907
      %921 = vmatpush.msra.mxu0 %v893
      %922 = vmatpush.msra.mxu0 %v880
      %923 = vmatpush.msra.mxu0 %v866
      %924 = vmatpush.msra.mxu0 %v789
      %925 = vmatpush.msra.mxu0 %v852
      %926 = vmatpush.msra.mxu0 %v838
      %927 = vmatpush.msra.mxu0 %v824
      %928 = vmatpush.msra.mxu0 %v811
      %929 = vmatmul.f32.gmra.mxu0 %v911
      %v930 = vpop.f32.mrf.mxu0
      %v931 = vadd.f32 0.0, %v930
      %932 = vdwg.mxu0
      %933 = vmatpush.msra.mxu0 0.0
      %934 = vmatpush.msra.mxu0 0.0
      %935 = vmatpush.msra.mxu0 0.0
      %936 = vmatpush.msra.mxu0 0.0
      %937 = vmatpush.msra.mxu0 0.0
      %938 = vmatpush.msra.mxu0 0.0
      %939 = vmatpush.msra.mxu0 0.0
      %940 = vmatpush.msra.mxu0 %v908
      %941 = vmatpush.msra.mxu0 %v894
      %942 = vmatpush.msra.mxu0 %v881
      %943 = vmatpush.msra.mxu0 %v867
      %944 = vmatpush.msra.mxu0 %v796
      %945 = vmatpush.msra.mxu0 %v853
      %946 = vmatpush.msra.mxu0 %v839
      %947 = vmatpush.msra.mxu0 %v825
      %948 = vmatpush.msra.mxu0 %v812
      %949 = vmatmul.f32.gmra.mxu0 %v911
      %v950 = vpop.f32.mrf.mxu0
      %v951 = vadd.f32 0.0, %v950
      %952 = vdwg.mxu0
      %v953 = vadd.f32 %v931, %v951
      %954 = vadd.xlane.f32.xlu0 %v953
      %v955 = vpop.xlane.xlu0 %954
      %v956 = vmul.f32 %v955, 0.00390625
      %v957 = vsub.f32 %v931, %v956
      %v958 = vsub.f32 %v951, %v956
      %v959 = vmul.f32 %v957, %v957
      %v960 = vmul.f32 %v958, %v958
      %v961 = vadd.f32 %v959, %v960
      %962 = vadd.xlane.f32.xlu0 %v961
      %v963 = vpop.xlane.xlu0 %962
      %v964 = vsel %vm845, %v955, %v963
      %vm965 = vcmask 15360
      %966 = vst.msk [vmem:[%s222] sm:$0xff] %vm965, %v964
      %p967 = scmp.lt.s32.totalorder %s16, 1
      %s968 = scalar_select %p967, %s16, 1
      %s969 = smul.addr %s968, 8
      %s970 = scalar_lea.vmem %s5, %s969
      // Predicated region
      $region41: #{up_conv_forward.2} parent=39 // pred_check
        %p971 = pneg %p144
      $region42: #{up_conv_forward.2} parent=39 // pred_check_branch
        %973 = sbr.rel (%p971) target = $region44
      $region43: #{up_conv_forward.2} parent=39 // pred_region
        _
      $region44: #{up_conv_forward.2} parent=39 // pred_fallthru
        _
    $region40: #{up_conv_forward.2} parent=5 // pred_fallthru
      _
    %p974 = scmp.le.s32.totalorder 2, %s11
    // Predicated region
    $region45: #{up_conv_forward.2} parent=5 // pred_check
      %p975 = pneg %p974
    $region46: #{up_conv_forward.2} parent=5 // pred_check_branch
      %977 = sbr.rel (%p975) target = $region48
    $region47: #{up_conv_forward.2} parent=5 // pred_region
      %s978 = ssub.s32 %s11, 2
      // Predicated region
      $region49: #{up_conv_forward.2} parent=47 // pred_check
        %p979 = pneg %p150
      $region50: #{up_conv_forward.2} parent=47 // pred_check_branch
        %981 = sbr.rel (%p979) target = $region52
      $region51: #{up_conv_forward.2} parent=47 // pred_region
        %p982 = scmp.lt.s32.totalorder %s17, 1
        %s983 = scalar_select %p982, %s17, 1
        %s984 = smul.addr %s983, 8
        %s985 = scalar_lea.vmem %s5, %s984
      $region52: #{up_conv_forward.2} parent=47 // pred_fallthru
        _
    $region48: #{up_conv_forward.2} parent=5 // pred_fallthru
      _
  $region6: #{up_conv_forward.2} parent=0 // loop_footer
    %s15 = sadd.s32 1, %s11
  $region7: #{up_conv_forward.2} parent=0 // loop_footer_branch
    %10 = sbr.rel target = $region3
  $region8: #{up_conv_forward.2} parent=0 // loop_exit
    _

</llo_original>
